<compile_context>
chip_gen: v7x
topology: tpu7x:2x2x1
jax: 0.10.0
libtpu: 0.0.40
codegen_flags: <defaults>
</compile_context>

<pallas_src>
import jax
import jax.numpy as jnp
from jax.experimental import pallas as pl
from jax.experimental.pallas import tpu as pltpu

IN_DIM = 32 * 32 * 3     # 3072
HID_DIM = 100
OUT_DIM = 10
HID_PAD = 128            # lane-dense padding of hidden dim
OUT_PAD = 128            # lane-dense padding of class dim


def _round_up(n, m):
    return (n + m - 1) // m * m


def net_kernel(x_ref, w1_ref, b1_ref, w2_ref, b2_ref, logits_ref):
    # fc1: bf16 x bf16 -> f32 accumulation on the MXU, then bias + ReLU (VPU)
    h = jnp.dot(x_ref[...], w1_ref[...], preferred_element_type=jnp.float32)
    h = jnp.maximum(h + b1_ref[...], 0.0)

    # TODO(synk): nn.Dropout(0.2) is identity in eval mode; train-mode stochastic
    # masking (pltpu.prng_random_bits) intentionally not applied here.

    # fc2: tiny (TM,128)x(128,128) f32 matmul + bias. log_softmax is hoisted outside.
    logits_ref[...] = (
        jnp.dot(h, w2_ref[...], preferred_element_type=jnp.float32) + b2_ref[...]
    )


def prepare_params(w1, b1, w2, b2):
    """One-time padding/casting of the weights into the kernel's lane-dense layout.

    Call this at module init (NOT per forward pass) so the per-call path never pays an
    extra HBM read/write of the weights. Zero padding is numerically exact (padded
    hidden columns of h are 0 and multiply padded zero rows of w2).
    """
    w1_p = jnp.zeros((IN_DIM, HID_PAD), jnp.bfloat16).at[:, :HID_DIM].set(
        w1.astype(jnp.bfloat16))
    b1_p = jnp.zeros((1, HID_PAD), jnp.float32).at[:, :HID_DIM].set(b1)
    w2_p = jnp.zeros((HID_PAD, OUT_PAD), jnp.float32).at[:HID_DIM, :OUT_DIM].set(w2)
    b2_p = jnp.zeros((1, OUT_PAD), jnp.float32).at[:, :OUT_DIM].set(b2)
    return w1_p, b1_p, w2_p, b2_p


def _pick_tm(B):
    # >=2 grid steps for moderate B so v7x's two TensorCores both get work under the
    # "parallel" batch axis (harmless on v5e/v6e: per-step overhead ~0.35 us).
    # Cap at 1024 rows: double-buffered bf16 x tile = 12 MiB, which together with the
    # resident weights (~0.9 MiB) and the double-buffered f32 output (~1 MiB) stays well
    # inside the explicit 48 MiB limit below and under v7x's 64 MiB physical VMEM.
    tm = _round_up(pl.cdiv(B, 2), 16)   # multiple of 16 for bf16 sublane packing
    return max(16, min(1024, tm))


def net_forward(x, w1_p, b1_p, w2_p, b2_p):
    """x: (B, 3072). Pass bf16 straight from the producer to avoid an extra HBM pass;
    padded weights come from prepare_params()."""
    B = x.shape[0]
    if x.dtype != jnp.bfloat16:
        x = x.astype(jnp.bfloat16)   # single cast, no zero-padded copy of the batch

    TM = _pick_tm(B)
    grid = (pl.cdiv(B, TM),)         # no batch padding; Pallas clips the partial tile

    cost = pl.CostEstimate(
        flops=2 * B * IN_DIM * HID_PAD + 2 * B * HID_PAD * OUT_PAD,
        transcendentals=0,
        bytes_accessed=(B * IN_DIM * 2 + w1_p.size * 2
                        + (b1_p.size + w2_p.size + b2_p.size) * 4
                        + B * OUT_PAD * 4),
    )

    logits_pad = pl.pallas_call(
        net_kernel,
        out_shape=jax.ShapeDtypeStruct((B, OUT_PAD), jnp.float32),
        grid=grid,
        in_specs=[
            pl.BlockSpec((TM, IN_DIM), lambda i: (i, 0)),        # x   (batch-tiled)
            # Constant index_map -> Mosaic keeps these VMEM-resident and elides the
            # repeated DMA across grid steps (second buffer reclaim via pl.Buffered(1)
            # intentionally not used; VMEM budget already has ample headroom).
            pl.BlockSpec((IN_DIM, HID_PAD), lambda i: (0, 0)),   # w1
            pl.BlockSpec((1, HID_PAD), lambda i: (0, 0)),        # b1
            pl.BlockSpec((HID_PAD, OUT_PAD), lambda i: (0, 0)),  # w2
            pl.BlockSpec((1, OUT_PAD), lambda i: (0, 0)),        # b2
        ],
        out_specs=pl.BlockSpec((TM, OUT_PAD), lambda i: (i, 0)),
        compiler_params=pltpu.CompilerParams(
            dimension_semantics=("parallel",),
            vmem_limit_bytes=48 << 20,
        ),
        cost_estimate=cost,
    )(x, w1_p, b1_p, w2_p, b2_p)

    # Slice the padded class columns away, then apply log_softmax over dim=0 (the batch
    # axis), faithful to the PyTorch module. Slicing to real rows/cols happens before the
    # reduction, so padding can never leak into it.
    logits = logits_pad[:, :OUT_DIM]
    return jax.nn.log_softmax(logits, axis=0)


def init_params(key):
    """Deterministic parameter init mimicking PyTorch Linear's U(-1/sqrt(in), 1/sqrt(in))."""
    k1, k2, k3, k4 = jax.random.split(key, 4)
    s1 = 1.0 / jnp.sqrt(jnp.float32(IN_DIM))
    s2 = 1.0 / jnp.sqrt(jnp.float32(HID_DIM))
    w1 = jax.random.uniform(k1, (IN_DIM, HID_DIM), jnp.float32, -s1, s1)
    b1 = jax.random.uniform(k2, (1, HID_DIM), jnp.float32, -s1, s1)
    w2 = jax.random.uniform(k3, (HID_DIM, OUT_DIM), jnp.float32, -s2, s2)
    b2 = jax.random.uniform(k4, (1, OUT_DIM), jnp.float32, -s2, s2)
    return w1, b1, w2, b2


def reference_forward_matched(x, w1, b1, w2, b2):
    """Pure-JAX reference using the same bf16 operand casting as the kernel."""
    h = jnp.dot(x.astype(jnp.bfloat16), w1.astype(jnp.bfloat16),
                preferred_element_type=jnp.float32)
    h = jnp.maximum(h + b1, 0.0)
    logits = jnp.dot(h, w2, preferred_element_type=jnp.float32) + b2
    return jax.nn.log_softmax(logits, axis=0)


def reference_forward_f32(x, w1, b1, w2, b2):
    """Full-f32 pure-JAX reference (eval-mode dropout)."""
    h = jnp.maximum(x @ w1 + b1, 0.0)
    logits = h @ w2 + b2
    return jax.nn.log_softmax(logits, axis=0)


if __name__ == "__main__":
    key = jax.random.PRNGKey(0)
    kx, kp = jax.random.split(key)

    B = 8
    x_f32 = jax.random.normal(kx, (B, IN_DIM), jnp.float32)
    w1, b1, w2, b2 = init_params(kp)

    # One-time weight prep (hoisted out of the per-call forward path).
    w1_p, b1_p, w2_p, b2_p = jax.block_until_ready(prepare_params(w1, b1, w2, b2))

    # Producer hands the kernel bf16 activations directly (no per-call pad/cast pass).
    x_bf16 = x_f32.astype(jnp.bfloat16)

    fwd = jax.jit(net_forward)
    out = jax.block_until_ready(fwd(x_bf16, w1_p, b1_p, w2_p, b2_p))
    assert out.shape == (B, OUT_DIM)

    ref_m = reference_forward_matched(x_f32, w1, b1, w2, b2)
    ref_f = reference_forward_f32(x_f32, w1, b1, w2, b2)
    assert jnp.allclose(out, ref_m, atol=2e-3, rtol=2e-3), "mismatch vs matched bf16 reference"
    assert jnp.allclose(out, ref_f, atol=5e-2, rtol=5e-2), "mismatch vs f32 reference"

    print("KERNEL_OK")
</pallas_src>

<mosaic_0001>
module attributes {stable_mosaic.version = 11 : i64} {
  func.func @net_kernel(%arg0: i32, %arg1: memref<16x3072xbf16, #tpu.memory_space<vmem>>, %arg2: memref<3072x128xbf16, #tpu.memory_space<vmem>>, %arg3: memref<1x128xf32, #tpu.memory_space<vmem>>, %arg4: memref<128x128xf32, #tpu.memory_space<vmem>>, %arg5: memref<1x128xf32, #tpu.memory_space<vmem>>, %arg6: memref<16x128xf32, #tpu.memory_space<vmem>>) attributes {dimension_semantics = [#tpu.dimension_semantics<parallel>], iteration_bounds = array<i64: 1>, scalar_prefetch = 0 : i64, scratch_operands = 0 : i64, tpu.core_type = #tpu.core_type<tc>, window_params = [{transform_indices = @transform_0, window_bounds = array<i64: 16, 3072>}, {pipeline_mode = #tpu.pipeline_mode<synchronous>, transform_indices = @transform_1, window_bounds = array<i64: 3072, 128>}, {pipeline_mode = #tpu.pipeline_mode<synchronous>, transform_indices = @transform_2, window_bounds = array<i64: 1, 128>}, {pipeline_mode = #tpu.pipeline_mode<synchronous>, transform_indices = @transform_3, window_bounds = array<i64: 128, 128>}, {pipeline_mode = #tpu.pipeline_mode<synchronous>, transform_indices = @transform_4, window_bounds = array<i64: 1, 128>}, {transform_indices = @transform_5, window_bounds = array<i64: 16, 128>}]} {
    %c0 = arith.constant 0 : index
    %c0_0 = arith.constant 0 : index
    %0 = vector.load %arg1[%c0, %c0_0] : memref<16x3072xbf16, #tpu.memory_space<vmem>>, vector<16x3072xbf16>
    %c0_1 = arith.constant 0 : index
    %c0_2 = arith.constant 0 : index
    %1 = vector.load %arg2[%c0_1, %c0_2] : memref<3072x128xbf16, #tpu.memory_space<vmem>>, vector<3072x128xbf16>
    %cst = arith.constant dense<0.000000e+00> : vector<16x128xf32>
    %2 = tpu.matmul %0, %1, %cst {dimension_numbers = #tpu.dot_dimension_numbers<[1], [0], [0], [1], [0, 0, 1, 1], [], []>} : vector<16x3072xbf16>, vector<3072x128xbf16>, vector<16x128xf32> -> vector<16x128xf32>
    %c0_3 = arith.constant 0 : index
    %c0_4 = arith.constant 0 : index
    %3 = vector.load %arg3[%c0_3, %c0_4] : memref<1x128xf32, #tpu.memory_space<vmem>>, vector<1x128xf32>
    %4 = vector.broadcast %3 : vector<1x128xf32> to vector<16x128xf32>
    %5 = arith.addf %2, %4 : vector<16x128xf32>
    %cst_5 = arith.constant 0.000000e+00 : f32
    %6 = vector.broadcast %cst_5 : f32 to vector<16x128xf32>
    %7 = arith.maximumf %5, %6 : vector<16x128xf32>
    %c0_6 = arith.constant 0 : index
    %c0_7 = arith.constant 0 : index
    %8 = vector.load %arg4[%c0_6, %c0_7] : memref<128x128xf32, #tpu.memory_space<vmem>>, vector<128x128xf32>
    %cst_8 = arith.constant dense<0.000000e+00> : vector<16x128xf32>
    %9 = tpu.matmul %7, %8, %cst_8 {dimension_numbers = #tpu.dot_dimension_numbers<[1], [0], [0], [1], [0, 0, 1, 1], [], []>} : vector<16x128xf32>, vector<128x128xf32>, vector<16x128xf32> -> vector<16x128xf32>
    %c0_9 = arith.constant 0 : index
    %c0_10 = arith.constant 0 : index
    %10 = vector.load %arg5[%c0_9, %c0_10] : memref<1x128xf32, #tpu.memory_space<vmem>>, vector<1x128xf32>
    %11 = vector.broadcast %10 : vector<1x128xf32> to vector<16x128xf32>
    %12 = arith.addf %9, %11 : vector<16x128xf32>
    %c0_11 = arith.constant 0 : index
    %c0_12 = arith.constant 0 : index
    %13 = vector.load %arg6[%c0_11, %c0_12] : memref<16x128xf32, #tpu.memory_space<vmem>>, vector<16x128xf32>
    tpu.vector_store %arg6[%c0_11, %c0_12], %12 {strides = array<i32>} : memref<16x128xf32, #tpu.memory_space<vmem>>, vector<16x128xf32>,
    return
  }
  func.func @transform_0(%arg0: i32) -> (i32, i32) {
    %c0_i32 = arith.constant 0 : i32
    %c0_i32_0 = arith.constant 0 : i32
    return %arg0, %c0_i32 : i32, i32
  }
  func.func @transform_1(%arg0: i32) -> (i32, i32) {
    %c0_i32 = arith.constant 0 : i32
    %c0_i32_0 = arith.constant 0 : i32
    %c0_i32_1 = arith.constant 0 : i32
    return %c0_i32, %c0_i32_0 : i32, i32
  }
  func.func @transform_2(%arg0: i32) -> (i32, i32) {
    %c0_i32 = arith.constant 0 : i32
    %c0_i32_0 = arith.constant 0 : i32
    %c0_i32_1 = arith.constant 0 : i32
    return %c0_i32, %c0_i32_0 : i32, i32
  }
  func.func @transform_3(%arg0: i32) -> (i32, i32) {
    %c0_i32 = arith.constant 0 : i32
    %c0_i32_0 = arith.constant 0 : i32
    %c0_i32_1 = arith.constant 0 : i32
    return %c0_i32, %c0_i32_0 : i32, i32
  }
  func.func @transform_4(%arg0: i32) -> (i32, i32) {
    %c0_i32 = arith.constant 0 : i32
    %c0_i32_0 = arith.constant 0 : i32
    %c0_i32_1 = arith.constant 0 : i32
    return %c0_i32, %c0_i32_0 : i32, i32
  }
  func.func @transform_5(%arg0: i32) -> (i32, i32) {
    %c0_i32 = arith.constant 0 : i32
    %c0_i32_0 = arith.constant 0 : i32
    return %arg0, %c0_i32 : i32, i32
  }
}

</mosaic_0001>

<llo_original>
// kernel: net_forward.1
$region0: #{net_forward.1}
  #allocation0 [shape = 'u32[]', space=smem, size = 0x4, offset = 0x4, fixed_abs, tag = 'smem constant byte address 0x4 - core index']
  #allocation1 [shape = 'u32[144,128]{1,0:T(1,128)}', space=vmem, size = 0x12000, scoped, tag = 'internal scratch']
  %s0 = inlined_call_operand.hbm [shape: bf16[8,3072], index: 0, kind: input, shape index: {}]
  %s1 = inlined_call_operand.hbm [shape: bf16[3072,128], index: 1, kind: input, shape index: {}]
  %s2 = inlined_call_operand.vmem [shape: f32[1,128], index: 2, kind: input, shape index: {}]
  %s3 = inlined_call_operand.hbm [shape: f32[128,128], index: 3, kind: input, shape index: {}]
  %s4 = inlined_call_operand.vmem [shape: f32[1,128], index: 4, kind: input, shape index: {}]
  %s5 = inlined_call_operand.vmem [shape: f32[8,128], index: 5, kind: output, shape index: {}]
  %s6 = sld [smem:[#allocation0]]
  $region76: #{net_forward.1} parent=0
    _
  %s8 = ssub.s32 1, %s6
  %s9 = scalar_select 0, %s8, %s6
  $region1: #{net_forward.1} parent=0
    #allocation2 [shape = 'u8[98304]{0}', space=vmem, size = 0x18000, scoped, tag = 'input window, operand 0, single buffered']
    #allocation3 [shape = 's32[1]{0}', space=sflag, size = 0x4, scoped, tag = 'scoped memory for net_forward.1']
    #allocation4 [shape = 'u8[786432]{0}', space=vmem, size = 0xc0000, scoped, tag = 'input window, operand 1, single buffered']
    #allocation5 [shape = 's32[1]{0}', space=sflag, size = 0x4, scoped, tag = 'scoped memory for net_forward.1']
    #allocation6 [shape = 'u8[65536]{0}', space=vmem, size = 0x10000, scoped, tag = 'input window, operand 3, single buffered']
    #allocation7 [shape = 'u8[8192]{0}', space=vmem, size = 0x2000, scoped, tag = 'output window, operand 0, single buffered']
    %10 = vsyncpa [#allocation3], 0
    %11 = vsyncpa [#allocation5], 0
    // Predicated region
    $region2: #{net_forward.1} parent=1 // pred_check
      _
    $region3: #{net_forward.1} parent=1 // pred_check_branch
      %13 = sbr.rel (0) target = $region5
    $region4: #{net_forward.1} parent=1 // pred_region
      %s15 = ssub.s32 3072, 1536
      %16 = vsyncadd [#allocation3], %s15
      %s17 = sshll.u32 [#allocation2], 4
      %s18 = int_to_ptr.vmem [resolvable:$true] %s17
      %23 = dma.hbm_to_vmem [thread:$0]  %s0, 1536, %s18, [#allocation3], 1536, 1536, 96
    $region5: #{net_forward.1} parent=1 // pred_fallthru
      _
    // Predicated region
    $region6: #{net_forward.1} parent=1 // pred_check
      _
    $region7: #{net_forward.1} parent=1 // pred_check_branch
      %25 = sbr.rel (0) target = $region9
    $region8: #{net_forward.1} parent=1 // pred_region
      %s27 = ssub.s32 24576, 24576
      %28 = vsyncadd [#allocation5], %s27
      %s29 = sshll.u32 [#allocation4], 4
      %s30 = int_to_ptr.vmem [resolvable:$true] %s29
      %35 = dma.hbm_to_vmem [thread:$0]  %s1, 24576, %s30, [#allocation5], 64, 64, 4
    $region9: #{net_forward.1} parent=1 // pred_fallthru
      _
    // Predicated region
    $region10: #{net_forward.1} parent=1 // pred_check
      _
    $region11: #{net_forward.1} parent=1 // pred_check_branch
      %37 = sbr.rel (0) target = $region13
    $region12: #{net_forward.1} parent=1 // pred_region
      _
    $region13: #{net_forward.1} parent=1 // pred_fallthru
      _
    // Predicated region
    $region14: #{net_forward.1} parent=1 // pred_check
      _
    $region15: #{net_forward.1} parent=1 // pred_check_branch
      %39 = sbr.rel (0) target = $region17
    $region16: #{net_forward.1} parent=1 // pred_region
      %s41 = ssub.s32 2048, 2048
      %42 = vsyncadd [#allocation5], %s41
      %s43 = sshll.u32 [#allocation6], 4
      %s44 = int_to_ptr.vmem [resolvable:$true] %s43
      %49 = dma.hbm_to_vmem [thread:$0]  %s3, 2048, %s44, [#allocation5], 128, 128, 8
    $region17: #{net_forward.1} parent=1 // pred_fallthru
      _
    // Predicated region
    $region18: #{net_forward.1} parent=1 // pred_check
      _
    $region19: #{net_forward.1} parent=1 // pred_check_branch
      %51 = sbr.rel (0) target = $region21
    $region20: #{net_forward.1} parent=1 // pred_region
      _
    $region21: #{net_forward.1} parent=1 // pred_fallthru
      _
    // Predicated region
    $region22: #{net_forward.1} parent=1 // pred_check
      _
    $region23: #{net_forward.1} parent=1 // pred_check_branch
      %53 = sbr.rel (0) target = $region25
    $region24: #{net_forward.1} parent=1 // pred_region
      %54 = dma.done [#allocation3], 3072
    $region25: #{net_forward.1} parent=1 // pred_fallthru
      _
    // Predicated region
    $region26: #{net_forward.1} parent=1 // pred_check
      _
    $region27: #{net_forward.1} parent=1 // pred_check_branch
      %56 = sbr.rel (0) target = $region29
    $region28: #{net_forward.1} parent=1 // pred_region
      %57 = dma.done [#allocation5], 24576
    $region29: #{net_forward.1} parent=1 // pred_fallthru
      _
    // Predicated region
    $region30: #{net_forward.1} parent=1 // pred_check
      _
    $region31: #{net_forward.1} parent=1 // pred_check_branch
      %59 = sbr.rel (0) target = $region33
    $region32: #{net_forward.1} parent=1 // pred_region
      %60 = dma.done [#allocation5], 2048
    $region33: #{net_forward.1} parent=1 // pred_fallthru
      _
    %v62 = vld [vmem:[#allocation2] sm:$0xff]
    %v63 = vld [vmem:[#allocation2 + $0x8] sm:$0xff]
    %v64 = vld [vmem:[#allocation2 + $0x10] sm:$0xff]
    %v65 = vld [vmem:[#allocation2 + $0x18] sm:$0xff]
    %v66 = vld [vmem:[#allocation2 + $0x20] sm:$0xff]
    %v67 = vld [vmem:[#allocation2 + $0x28] sm:$0xff]
    %v68 = vld [vmem:[#allocation2 + $0x30] sm:$0xff]
    %v69 = vld [vmem:[#allocation2 + $0x38] sm:$0xff]
    %v70 = vld [vmem:[#allocation2 + $0x40] sm:$0xff]
    %v71 = vld [vmem:[#allocation2 + $0x48] sm:$0xff]
    %v72 = vld [vmem:[#allocation2 + $0x50] sm:$0xff]
    %v73 = vld [vmem:[#allocation2 + $0x58] sm:$0xff]
    %v74 = vld [vmem:[#allocation2 + $0x60] sm:$0xff]
    %v75 = vld [vmem:[#allocation2 + $0x68] sm:$0xff]
    %v76 = vld [vmem:[#allocation2 + $0x70] sm:$0xff]
    %v77 = vld [vmem:[#allocation2 + $0x78] sm:$0xff]
    %v78 = vld [vmem:[#allocation2 + $0x80] sm:$0xff]
    %v79 = vld [vmem:[#allocation2 + $0x88] sm:$0xff]
    %v80 = vld [vmem:[#allocation2 + $0x90] sm:$0xff]
    %v81 = vld [vmem:[#allocation2 + $0x98] sm:$0xff]
    %v82 = vld [vmem:[#allocation2 + $0xa0] sm:$0xff]
    %v83 = vld [vmem:[#allocation2 + $0xa8] sm:$0xff]
    %v84 = vld [vmem:[#allocation2 + $0xb0] sm:$0xff]
    %v85 = vld [vmem:[#allocation2 + $0xb8] sm:$0xff]
    %v86 = vld [vmem:[#allocation4] sm:$0xf]
    %v87 = vld [vmem:[#allocation4 + $0x4] sm:$0xf]
    %v88 = vld [vmem:[#allocation4 + $0x8] sm:$0xf]
    %v89 = vld [vmem:[#allocation4 + $0xc] sm:$0xf]
    %v90 = vld [vmem:[#allocation4 + $0x10] sm:$0xf]
    %v91 = vld [vmem:[#allocation4 + $0x14] sm:$0xf]
    %v92 = vld [vmem:[#allocation4 + $0x18] sm:$0xf]
    %v93 = vld [vmem:[#allocation4 + $0x1c] sm:$0xf]
    %v94 = vld [vmem:[#allocation4 + $0x20] sm:$0xf]
    %v95 = vld [vmem:[#allocation4 + $0x24] sm:$0xf]
    %v96 = vld [vmem:[#allocation4 + $0x28] sm:$0xf]
    %v97 = vld [vmem:[#allocation4 + $0x2c] sm:$0xf]
    %v98 = vld [vmem:[#allocation4 + $0x30] sm:$0xf]
    %v99 = vld [vmem:[#allocation4 + $0x34] sm:$0xf]
    %v100 = vld [vmem:[#allocation4 + $0x38] sm:$0xf]
    %v101 = vld [vmem:[#allocation4 + $0x3c] sm:$0xf]
    %v102 = vld [vmem:[#allocation4 + $0x40] sm:$0xf]
    %v103 = vld [vmem:[#allocation4 + $0x44] sm:$0xf]
    %v104 = vld [vmem:[#allocation4 + $0x48] sm:$0xf]
    %v105 = vld [vmem:[#allocation4 + $0x4c] sm:$0xf]
    %v106 = vld [vmem:[#allocation4 + $0x50] sm:$0xf]
    %v107 = vld [vmem:[#allocation4 + $0x54] sm:$0xf]
    %v108 = vld [vmem:[#allocation4 + $0x58] sm:$0xf]
    %v109 = vld [vmem:[#allocation4 + $0x5c] sm:$0xf]
    %v110 = vld [vmem:[#allocation4 + $0x60] sm:$0xf]
    %v111 = vld [vmem:[#allocation4 + $0x64] sm:$0xf]
    %v112 = vld [vmem:[#allocation4 + $0x68] sm:$0xf]
    %v113 = vld [vmem:[#allocation4 + $0x6c] sm:$0xf]
    %v114 = vld [vmem:[#allocation4 + $0x70] sm:$0xf]
    %v115 = vld [vmem:[#allocation4 + $0x74] sm:$0xf]
    %v116 = vld [vmem:[#allocation4 + $0x78] sm:$0xf]
    %v117 = vld [vmem:[#allocation4 + $0x7c] sm:$0xf]
    %v118 = vld [vmem:[#allocation4 + $0x80] sm:$0xf]
    %v119 = vld [vmem:[#allocation4 + $0x84] sm:$0xf]
    %v120 = vld [vmem:[#allocation4 + $0x88] sm:$0xf]
    %v121 = vld [vmem:[#allocation4 + $0x8c] sm:$0xf]
    %v122 = vld [vmem:[#allocation4 + $0x90] sm:$0xf]
    %v123 = vld [vmem:[#allocation4 + $0x94] sm:$0xf]
    %v124 = vld [vmem:[#allocation4 + $0x98] sm:$0xf]
    %v125 = vld [vmem:[#allocation4 + $0x9c] sm:$0xf]
    %v126 = vld [vmem:[#allocation4 + $0xa0] sm:$0xf]
    %v127 = vld [vmem:[#allocation4 + $0xa4] sm:$0xf]
    %v128 = vld [vmem:[#allocation4 + $0xa8] sm:$0xf]
    %v129 = vld [vmem:[#allocation4 + $0xac] sm:$0xf]
    %v130 = vld [vmem:[#allocation4 + $0xb0] sm:$0xf]
    %v131 = vld [vmem:[#allocation4 + $0xb4] sm:$0xf]
    %v132 = vld [vmem:[#allocation4 + $0xb8] sm:$0xf]
    %v133 = vld [vmem:[#allocation4 + $0xbc] sm:$0xf]
    %v134 = vld [vmem:[#allocation4 + $0xc0] sm:$0xf]
    %v135 = vld [vmem:[#allocation4 + $0xc4] sm:$0xf]
    %v136 = vld [vmem:[#allocation4 + $0xc8] sm:$0xf]
    %v137 = vld [vmem:[#allocation4 + $0xcc] sm:$0xf]
    %v138 = vld [vmem:[#allocation4 + $0xd0] sm:$0xf]
    %v139 = vld [vmem:[#allocation4 + $0xd4] sm:$0xf]
    %v140 = vld [vmem:[#allocation4 + $0xd8] sm:$0xf]
    %v141 = vld [vmem:[#allocation4 + $0xdc] sm:$0xf]
    %v142 = vld [vmem:[#allocation4 + $0xe0] sm:$0xf]
    %v143 = vld [vmem:[#allocation4 + $0xe4] sm:$0xf]
    %v144 = vld [vmem:[#allocation4 + $0xe8] sm:$0xf]
    %v145 = vld [vmem:[#allocation4 + $0xec] sm:$0xf]
    %v146 = vld [vmem:[#allocation4 + $0xf0] sm:$0xf]
    %v147 = vld [vmem:[#allocation4 + $0xf4] sm:$0xf]
    %v148 = vld [vmem:[#allocation4 + $0xf8] sm:$0xf]
    %v149 = vld [vmem:[#allocation4 + $0xfc] sm:$0xf]
    %v150 = vld [vmem:[#allocation4 + $0x100] sm:$0xf]
    %v151 = vld [vmem:[#allocation4 + $0x104] sm:$0xf]
    %v152 = vld [vmem:[#allocation4 + $0x108] sm:$0xf]
    %v153 = vld [vmem:[#allocation4 + $0x10c] sm:$0xf]
    %v154 = vld [vmem:[#allocation4 + $0x110] sm:$0xf]
    %v155 = vld [vmem:[#allocation4 + $0x114] sm:$0xf]
    %v156 = vld [vmem:[#allocation4 + $0x118] sm:$0xf]
    %v157 = vld [vmem:[#allocation4 + $0x11c] sm:$0xf]
    %v158 = vld [vmem:[#allocation4 + $0x120] sm:$0xf]
    %v159 = vld [vmem:[#allocation4 + $0x124] sm:$0xf]
    %v160 = vld [vmem:[#allocation4 + $0x128] sm:$0xf]
    %v161 = vld [vmem:[#allocation4 + $0x12c] sm:$0xf]
    %v162 = vld [vmem:[#allocation4 + $0x130] sm:$0xf]
    %v163 = vld [vmem:[#allocation4 + $0x134] sm:$0xf]
    %v164 = vld [vmem:[#allocation4 + $0x138] sm:$0xf]
    %v165 = vld [vmem:[#allocation4 + $0x13c] sm:$0xf]
    %v166 = vld [vmem:[#allocation4 + $0x140] sm:$0xf]
    %v167 = vld [vmem:[#allocation4 + $0x144] sm:$0xf]
    %v168 = vld [vmem:[#allocation4 + $0x148] sm:$0xf]
    %v169 = vld [vmem:[#allocation4 + $0x14c] sm:$0xf]
    %v170 = vld [vmem:[#allocation4 + $0x150] sm:$0xf]
    %v171 = vld [vmem:[#allocation4 + $0x154] sm:$0xf]
    %v172 = vld [vmem:[#allocation4 + $0x158] sm:$0xf]
    %v173 = vld [vmem:[#allocation4 + $0x15c] sm:$0xf]
    %v174 = vld [vmem:[#allocation4 + $0x160] sm:$0xf]
    %v175 = vld [vmem:[#allocation4 + $0x164] sm:$0xf]
    %v176 = vld [vmem:[#allocation4 + $0x168] sm:$0xf]
    %v177 = vld [vmem:[#allocation4 + $0x16c] sm:$0xf]
    %v178 = vld [vmem:[#allocation4 + $0x170] sm:$0xf]
    %v179 = vld [vmem:[#allocation4 + $0x174] sm:$0xf]
    %v180 = vld [vmem:[#allocation4 + $0x178] sm:$0xf]
    %v181 = vld [vmem:[#allocation4 + $0x17c] sm:$0xf]
    %v182 = vld [vmem:[#allocation4 + $0x180] sm:$0xf]
    %v183 = vld [vmem:[#allocation4 + $0x184] sm:$0xf]
    %v184 = vld [vmem:[#allocation4 + $0x188] sm:$0xf]
    %v185 = vld [vmem:[#allocation4 + $0x18c] sm:$0xf]
    %v186 = vld [vmem:[#allocation4 + $0x190] sm:$0xf]
    %v187 = vld [vmem:[#allocation4 + $0x194] sm:$0xf]
    %v188 = vld [vmem:[#allocation4 + $0x198] sm:$0xf]
    %v189 = vld [vmem:[#allocation4 + $0x19c] sm:$0xf]
    %v190 = vld [vmem:[#allocation4 + $0x1a0] sm:$0xf]
    %v191 = vld [vmem:[#allocation4 + $0x1a4] sm:$0xf]
    %v192 = vld [vmem:[#allocation4 + $0x1a8] sm:$0xf]
    %v193 = vld [vmem:[#allocation4 + $0x1ac] sm:$0xf]
    %v194 = vld [vmem:[#allocation4 + $0x1b0] sm:$0xf]
    %v195 = vld [vmem:[#allocation4 + $0x1b4] sm:$0xf]
    %v196 = vld [vmem:[#allocation4 + $0x1b8] sm:$0xf]
    %v197 = vld [vmem:[#allocation4 + $0x1bc] sm:$0xf]
    %v198 = vld [vmem:[#allocation4 + $0x1c0] sm:$0xf]
    %v199 = vld [vmem:[#allocation4 + $0x1c4] sm:$0xf]
    %v200 = vld [vmem:[#allocation4 + $0x1c8] sm:$0xf]
    %v201 = vld [vmem:[#allocation4 + $0x1cc] sm:$0xf]
    %v202 = vld [vmem:[#allocation4 + $0x1d0] sm:$0xf]
    %v203 = vld [vmem:[#allocation4 + $0x1d4] sm:$0xf]
    %v204 = vld [vmem:[#allocation4 + $0x1d8] sm:$0xf]
    %v205 = vld [vmem:[#allocation4 + $0x1dc] sm:$0xf]
    %v206 = vld [vmem:[#allocation4 + $0x1e0] sm:$0xf]
    %v207 = vld [vmem:[#allocation4 + $0x1e4] sm:$0xf]
    %v208 = vld [vmem:[#allocation4 + $0x1e8] sm:$0xf]
    %v209 = vld [vmem:[#allocation4 + $0x1ec] sm:$0xf]
    %v210 = vld [vmem:[#allocation4 + $0x1f0] sm:$0xf]
    %v211 = vld [vmem:[#allocation4 + $0x1f4] sm:$0xf]
    %v212 = vld [vmem:[#allocation4 + $0x1f8] sm:$0xf]
    %v213 = vld [vmem:[#allocation4 + $0x1fc] sm:$0xf]
    %v214 = vld [vmem:[#allocation4 + $0x200] sm:$0xf]
    %v215 = vld [vmem:[#allocation4 + $0x204] sm:$0xf]
    %v216 = vld [vmem:[#allocation4 + $0x208] sm:$0xf]
    %v217 = vld [vmem:[#allocation4 + $0x20c] sm:$0xf]
    %v218 = vld [vmem:[#allocation4 + $0x210] sm:$0xf]
    %v219 = vld [vmem:[#allocation4 + $0x214] sm:$0xf]
    %v220 = vld [vmem:[#allocation4 + $0x218] sm:$0xf]
    %v221 = vld [vmem:[#allocation4 + $0x21c] sm:$0xf]
    %v222 = vld [vmem:[#allocation4 + $0x220] sm:$0xf]
    %v223 = vld [vmem:[#allocation4 + $0x224] sm:$0xf]
    %v224 = vld [vmem:[#allocation4 + $0x228] sm:$0xf]
    %v225 = vld [vmem:[#allocation4 + $0x22c] sm:$0xf]
    %v226 = vld [vmem:[#allocation4 + $0x230] sm:$0xf]
    %v227 = vld [vmem:[#allocation4 + $0x234] sm:$0xf]
    %v228 = vld [vmem:[#allocation4 + $0x238] sm:$0xf]
    %v229 = vld [vmem:[#allocation4 + $0x23c] sm:$0xf]
    %v230 = vld [vmem:[#allocation4 + $0x240] sm:$0xf]
    %v231 = vld [vmem:[#allocation4 + $0x244] sm:$0xf]
    %v232 = vld [vmem:[#allocation4 + $0x248] sm:$0xf]
    %v233 = vld [vmem:[#allocation4 + $0x24c] sm:$0xf]
    %v234 = vld [vmem:[#allocation4 + $0x250] sm:$0xf]
    %v235 = vld [vmem:[#allocation4 + $0x254] sm:$0xf]
    %v236 = vld [vmem:[#allocation4 + $0x258] sm:$0xf]
    %v237 = vld [vmem:[#allocation4 + $0x25c] sm:$0xf]
    %v238 = vld [vmem:[#allocation4 + $0x260] sm:$0xf]
    %v239 = vld [vmem:[#allocation4 + $0x264] sm:$0xf]
    %v240 = vld [vmem:[#allocation4 + $0x268] sm:$0xf]
    %v241 = vld [vmem:[#allocation4 + $0x26c] sm:$0xf]
    %v242 = vld [vmem:[#allocation4 + $0x270] sm:$0xf]
    %v243 = vld [vmem:[#allocation4 + $0x274] sm:$0xf]
    %v244 = vld [vmem:[#allocation4 + $0x278] sm:$0xf]
    %v245 = vld [vmem:[#allocation4 + $0x27c] sm:$0xf]
    %v246 = vld [vmem:[#allocation4 + $0x280] sm:$0xf]
    %v247 = vld [vmem:[#allocation4 + $0x284] sm:$0xf]
    %v248 = vld [vmem:[#allocation4 + $0x288] sm:$0xf]
    %v249 = vld [vmem:[#allocation4 + $0x28c] sm:$0xf]
    %v250 = vld [vmem:[#allocation4 + $0x290] sm:$0xf]
    %v251 = vld [vmem:[#allocation4 + $0x294] sm:$0xf]
    %v252 = vld [vmem:[#allocation4 + $0x298] sm:$0xf]
    %v253 = vld [vmem:[#allocation4 + $0x29c] sm:$0xf]
    %v254 = vld [vmem:[#allocation4 + $0x2a0] sm:$0xf]
    %v255 = vld [vmem:[#allocation4 + $0x2a4] sm:$0xf]
    %v256 = vld [vmem:[#allocation4 + $0x2a8] sm:$0xf]
    %v257 = vld [vmem:[#allocation4 + $0x2ac] sm:$0xf]
    %v258 = vld [vmem:[#allocation4 + $0x2b0] sm:$0xf]
    %v259 = vld [vmem:[#allocation4 + $0x2b4] sm:$0xf]
    %v260 = vld [vmem:[#allocation4 + $0x2b8] sm:$0xf]
    %v261 = vld [vmem:[#allocation4 + $0x2bc] sm:$0xf]
    %v262 = vld [vmem:[#allocation4 + $0x2c0] sm:$0xf]
    %v263 = vld [vmem:[#allocation4 + $0x2c4] sm:$0xf]
    %v264 = vld [vmem:[#allocation4 + $0x2c8] sm:$0xf]
    %v265 = vld [vmem:[#allocation4 + $0x2cc] sm:$0xf]
    %v266 = vld [vmem:[#allocation4 + $0x2d0] sm:$0xf]
    %v267 = vld [vmem:[#allocation4 + $0x2d4] sm:$0xf]
    %v268 = vld [vmem:[#allocation4 + $0x2d8] sm:$0xf]
    %v269 = vld [vmem:[#allocation4 + $0x2dc] sm:$0xf]
    %v270 = vld [vmem:[#allocation4 + $0x2e0] sm:$0xf]
    %v271 = vld [vmem:[#allocation4 + $0x2e4] sm:$0xf]
    %v272 = vld [vmem:[#allocation4 + $0x2e8] sm:$0xf]
    %v273 = vld [vmem:[#allocation4 + $0x2ec] sm:$0xf]
    %v274 = vld [vmem:[#allocation4 + $0x2f0] sm:$0xf]
    %v275 = vld [vmem:[#allocation4 + $0x2f4] sm:$0xf]
    %v276 = vld [vmem:[#allocation4 + $0x2f8] sm:$0xf]
    %v277 = vld [vmem:[#allocation4 + $0x2fc] sm:$0xf]
    %v278 = vld [vmem:[#allocation4 + $0x300] sm:$0xf]
    %v279 = vld [vmem:[#allocation4 + $0x304] sm:$0xf]
    %v280 = vld [vmem:[#allocation4 + $0x308] sm:$0xf]
    %v281 = vld [vmem:[#allocation4 + $0x30c] sm:$0xf]
    %v282 = vld [vmem:[#allocation4 + $0x310] sm:$0xf]
    %v283 = vld [vmem:[#allocation4 + $0x314] sm:$0xf]
    %v284 = vld [vmem:[#allocation4 + $0x318] sm:$0xf]
    %v285 = vld [vmem:[#allocation4 + $0x31c] sm:$0xf]
    %v286 = vld [vmem:[#allocation4 + $0x320] sm:$0xf]
    %v287 = vld [vmem:[#allocation4 + $0x324] sm:$0xf]
    %v288 = vld [vmem:[#allocation4 + $0x328] sm:$0xf]
    %v289 = vld [vmem:[#allocation4 + $0x32c] sm:$0xf]
    %v290 = vld [vmem:[#allocation4 + $0x330] sm:$0xf]
    %v291 = vld [vmem:[#allocation4 + $0x334] sm:$0xf]
    %v292 = vld [vmem:[#allocation4 + $0x338] sm:$0xf]
    %v293 = vld [vmem:[#allocation4 + $0x33c] sm:$0xf]
    %v294 = vld [vmem:[#allocation4 + $0x340] sm:$0xf]
    %v295 = vld [vmem:[#allocation4 + $0x344] sm:$0xf]
    %v296 = vld [vmem:[#allocation4 + $0x348] sm:$0xf]
    %v297 = vld [vmem:[#allocation4 + $0x34c] sm:$0xf]
    %v298 = vld [vmem:[#allocation4 + $0x350] sm:$0xf]
    %v299 = vld [vmem:[#allocation4 + $0x354] sm:$0xf]
    %v300 = vld [vmem:[#allocation4 + $0x358] sm:$0xf]
    %v301 = vld [vmem:[#allocation4 + $0x35c] sm:$0xf]
    %v302 = vld [vmem:[#allocation4 + $0x360] sm:$0xf]
    %v303 = vld [vmem:[#allocation4 + $0x364] sm:$0xf]
    %v304 = vld [vmem:[#allocation4 + $0x368] sm:$0xf]
    %v305 = vld [vmem:[#allocation4 + $0x36c] sm:$0xf]
    %v306 = vld [vmem:[#allocation4 + $0x370] sm:$0xf]
    %v307 = vld [vmem:[#allocation4 + $0x374] sm:$0xf]
    %v308 = vld [vmem:[#allocation4 + $0x378] sm:$0xf]
    %v309 = vld [vmem:[#allocation4 + $0x37c] sm:$0xf]
    %v310 = vld [vmem:[#allocation4 + $0x380] sm:$0xf]
    %v311 = vld [vmem:[#allocation4 + $0x384] sm:$0xf]
    %v312 = vld [vmem:[#allocation4 + $0x388] sm:$0xf]
    %v313 = vld [vmem:[#allocation4 + $0x38c] sm:$0xf]
    %v314 = vld [vmem:[#allocation4 + $0x390] sm:$0xf]
    %v315 = vld [vmem:[#allocation4 + $0x394] sm:$0xf]
    %v316 = vld [vmem:[#allocation4 + $0x398] sm:$0xf]
    %v317 = vld [vmem:[#allocation4 + $0x39c] sm:$0xf]
    %v318 = vld [vmem:[#allocation4 + $0x3a0] sm:$0xf]
    %v319 = vld [vmem:[#allocation4 + $0x3a4] sm:$0xf]
    %v320 = vld [vmem:[#allocation4 + $0x3a8] sm:$0xf]
    %v321 = vld [vmem:[#allocation4 + $0x3ac] sm:$0xf]
    %v322 = vld [vmem:[#allocation4 + $0x3b0] sm:$0xf]
    %v323 = vld [vmem:[#allocation4 + $0x3b4] sm:$0xf]
    %v324 = vld [vmem:[#allocation4 + $0x3b8] sm:$0xf]
    %v325 = vld [vmem:[#allocation4 + $0x3bc] sm:$0xf]
    %v326 = vld [vmem:[#allocation4 + $0x3c0] sm:$0xf]
    %v327 = vld [vmem:[#allocation4 + $0x3c4] sm:$0xf]
    %v328 = vld [vmem:[#allocation4 + $0x3c8] sm:$0xf]
    %v329 = vld [vmem:[#allocation4 + $0x3cc] sm:$0xf]
    %v330 = vld [vmem:[#allocation4 + $0x3d0] sm:$0xf]
    %v331 = vld [vmem:[#allocation4 + $0x3d4] sm:$0xf]
    %v332 = vld [vmem:[#allocation4 + $0x3d8] sm:$0xf]
    %v333 = vld [vmem:[#allocation4 + $0x3dc] sm:$0xf]
    %v334 = vld [vmem:[#allocation4 + $0x3e0] sm:$0xf]
    %v335 = vld [vmem:[#allocation4 + $0x3e4] sm:$0xf]
    %v336 = vld [vmem:[#allocation4 + $0x3e8] sm:$0xf]
    %v337 = vld [vmem:[#allocation4 + $0x3ec] sm:$0xf]
    %v338 = vld [vmem:[#allocation4 + $0x3f0] sm:$0xf]
    %v339 = vld [vmem:[#allocation4 + $0x3f4] sm:$0xf]
    %v340 = vld [vmem:[#allocation4 + $0x3f8] sm:$0xf]
    %v341 = vld [vmem:[#allocation4 + $0x3fc] sm:$0xf]
    %v342 = vld [vmem:[#allocation4 + $0x400] sm:$0xf]
    %v343 = vld [vmem:[#allocation4 + $0x404] sm:$0xf]
    %v344 = vld [vmem:[#allocation4 + $0x408] sm:$0xf]
    %v345 = vld [vmem:[#allocation4 + $0x40c] sm:$0xf]
    %v346 = vld [vmem:[#allocation4 + $0x410] sm:$0xf]
    %v347 = vld [vmem:[#allocation4 + $0x414] sm:$0xf]
    %v348 = vld [vmem:[#allocation4 + $0x418] sm:$0xf]
    %v349 = vld [vmem:[#allocation4 + $0x41c] sm:$0xf]
    %v350 = vld [vmem:[#allocation4 + $0x420] sm:$0xf]
    %v351 = vld [vmem:[#allocation4 + $0x424] sm:$0xf]
    %v352 = vld [vmem:[#allocation4 + $0x428] sm:$0xf]
    %v353 = vld [vmem:[#allocation4 + $0x42c] sm:$0xf]
    %v354 = vld [vmem:[#allocation4 + $0x430] sm:$0xf]
    %v355 = vld [vmem:[#allocation4 + $0x434] sm:$0xf]
    %v356 = vld [vmem:[#allocation4 + $0x438] sm:$0xf]
    %v357 = vld [vmem:[#allocation4 + $0x43c] sm:$0xf]
    %v358 = vld [vmem:[#allocation4 + $0x440] sm:$0xf]
    %v359 = vld [vmem:[#allocation4 + $0x444] sm:$0xf]
    %v360 = vld [vmem:[#allocation4 + $0x448] sm:$0xf]
    %v361 = vld [vmem:[#allocation4 + $0x44c] sm:$0xf]
    %v362 = vld [vmem:[#allocation4 + $0x450] sm:$0xf]
    %v363 = vld [vmem:[#allocation4 + $0x454] sm:$0xf]
    %v364 = vld [vmem:[#allocation4 + $0x458] sm:$0xf]
    %v365 = vld [vmem:[#allocation4 + $0x45c] sm:$0xf]
    %v366 = vld [vmem:[#allocation4 + $0x460] sm:$0xf]
    %v367 = vld [vmem:[#allocation4 + $0x464] sm:$0xf]
    %v368 = vld [vmem:[#allocation4 + $0x468] sm:$0xf]
    %v369 = vld [vmem:[#allocation4 + $0x46c] sm:$0xf]
    %v370 = vld [vmem:[#allocation4 + $0x470] sm:$0xf]
    %v371 = vld [vmem:[#allocation4 + $0x474] sm:$0xf]
    %v372 = vld [vmem:[#allocation4 + $0x478] sm:$0xf]
    %v373 = vld [vmem:[#allocation4 + $0x47c] sm:$0xf]
    %v374 = vld [vmem:[#allocation4 + $0x480] sm:$0xf]
    %v375 = vld [vmem:[#allocation4 + $0x484] sm:$0xf]
    %v376 = vld [vmem:[#allocation4 + $0x488] sm:$0xf]
    %v377 = vld [vmem:[#allocation4 + $0x48c] sm:$0xf]
    %v378 = vld [vmem:[#allocation4 + $0x490] sm:$0xf]
    %v379 = vld [vmem:[#allocation4 + $0x494] sm:$0xf]
    %v380 = vld [vmem:[#allocation4 + $0x498] sm:$0xf]
    %v381 = vld [vmem:[#allocation4 + $0x49c] sm:$0xf]
    %v382 = vld [vmem:[#allocation4 + $0x4a0] sm:$0xf]
    %v383 = vld [vmem:[#allocation4 + $0x4a4] sm:$0xf]
    %v384 = vld [vmem:[#allocation4 + $0x4a8] sm:$0xf]
    %v385 = vld [vmem:[#allocation4 + $0x4ac] sm:$0xf]
    %v386 = vld [vmem:[#allocation4 + $0x4b0] sm:$0xf]
    %v387 = vld [vmem:[#allocation4 + $0x4b4] sm:$0xf]
    %v388 = vld [vmem:[#allocation4 + $0x4b8] sm:$0xf]
    %v389 = vld [vmem:[#allocation4 + $0x4bc] sm:$0xf]
    %v390 = vld [vmem:[#allocation4 + $0x4c0] sm:$0xf]
    %v391 = vld [vmem:[#allocation4 + $0x4c4] sm:$0xf]
    %v392 = vld [vmem:[#allocation4 + $0x4c8] sm:$0xf]
    %v393 = vld [vmem:[#allocation4 + $0x4cc] sm:$0xf]
    %v394 = vld [vmem:[#allocation4 + $0x4d0] sm:$0xf]
    %v395 = vld [vmem:[#allocation4 + $0x4d4] sm:$0xf]
    %v396 = vld [vmem:[#allocation4 + $0x4d8] sm:$0xf]
    %v397 = vld [vmem:[#allocation4 + $0x4dc] sm:$0xf]
    %v398 = vld [vmem:[#allocation4 + $0x4e0] sm:$0xf]
    %v399 = vld [vmem:[#allocation4 + $0x4e4] sm:$0xf]
    %v400 = vld [vmem:[#allocation4 + $0x4e8] sm:$0xf]
    %v401 = vld [vmem:[#allocation4 + $0x4ec] sm:$0xf]
    %v402 = vld [vmem:[#allocation4 + $0x4f0] sm:$0xf]
    %v403 = vld [vmem:[#allocation4 + $0x4f4] sm:$0xf]
    %v404 = vld [vmem:[#allocation4 + $0x4f8] sm:$0xf]
    %v405 = vld [vmem:[#allocation4 + $0x4fc] sm:$0xf]
    %v406 = vld [vmem:[#allocation4 + $0x500] sm:$0xf]
    %v407 = vld [vmem:[#allocation4 + $0x504] sm:$0xf]
    %v408 = vld [vmem:[#allocation4 + $0x508] sm:$0xf]
    %v409 = vld [vmem:[#allocation4 + $0x50c] sm:$0xf]
    %v410 = vld [vmem:[#allocation4 + $0x510] sm:$0xf]
    %v411 = vld [vmem:[#allocation4 + $0x514] sm:$0xf]
    %v412 = vld [vmem:[#allocation4 + $0x518] sm:$0xf]
    %v413 = vld [vmem:[#allocation4 + $0x51c] sm:$0xf]
    %v414 = vld [vmem:[#allocation4 + $0x520] sm:$0xf]
    %v415 = vld [vmem:[#allocation4 + $0x524] sm:$0xf]
    %v416 = vld [vmem:[#allocation4 + $0x528] sm:$0xf]
    %v417 = vld [vmem:[#allocation4 + $0x52c] sm:$0xf]
    %v418 = vld [vmem:[#allocation4 + $0x530] sm:$0xf]
    %v419 = vld [vmem:[#allocation4 + $0x534] sm:$0xf]
    %v420 = vld [vmem:[#allocation4 + $0x538] sm:$0xf]
    %v421 = vld [vmem:[#allocation4 + $0x53c] sm:$0xf]
    %v422 = vld [vmem:[#allocation4 + $0x540] sm:$0xf]
    %v423 = vld [vmem:[#allocation4 + $0x544] sm:$0xf]
    %v424 = vld [vmem:[#allocation4 + $0x548] sm:$0xf]
    %v425 = vld [vmem:[#allocation4 + $0x54c] sm:$0xf]
    %v426 = vld [vmem:[#allocation4 + $0x550] sm:$0xf]
    %v427 = vld [vmem:[#allocation4 + $0x554] sm:$0xf]
    %v428 = vld [vmem:[#allocation4 + $0x558] sm:$0xf]
    %v429 = vld [vmem:[#allocation4 + $0x55c] sm:$0xf]
    %v430 = vld [vmem:[#allocation4 + $0x560] sm:$0xf]
    %v431 = vld [vmem:[#allocation4 + $0x564] sm:$0xf]
    %v432 = vld [vmem:[#allocation4 + $0x568] sm:$0xf]
    %v433 = vld [vmem:[#allocation4 + $0x56c] sm:$0xf]
    %v434 = vld [vmem:[#allocation4 + $0x570] sm:$0xf]
    %v435 = vld [vmem:[#allocation4 + $0x574] sm:$0xf]
    %v436 = vld [vmem:[#allocation4 + $0x578] sm:$0xf]
    %v437 = vld [vmem:[#allocation4 + $0x57c] sm:$0xf]
    %v438 = vld [vmem:[#allocation4 + $0x580] sm:$0xf]
    %v439 = vld [vmem:[#allocation4 + $0x584] sm:$0xf]
    %v440 = vld [vmem:[#allocation4 + $0x588] sm:$0xf]
    %v441 = vld [vmem:[#allocation4 + $0x58c] sm:$0xf]
    %v442 = vld [vmem:[#allocation4 + $0x590] sm:$0xf]
    %v443 = vld [vmem:[#allocation4 + $0x594] sm:$0xf]
    %v444 = vld [vmem:[#allocation4 + $0x598] sm:$0xf]
    %v445 = vld [vmem:[#allocation4 + $0x59c] sm:$0xf]
    %v446 = vld [vmem:[#allocation4 + $0x5a0] sm:$0xf]
    %v447 = vld [vmem:[#allocation4 + $0x5a4] sm:$0xf]
    %v448 = vld [vmem:[#allocation4 + $0x5a8] sm:$0xf]
    %v449 = vld [vmem:[#allocation4 + $0x5ac] sm:$0xf]
    %v450 = vld [vmem:[#allocation4 + $0x5b0] sm:$0xf]
    %v451 = vld [vmem:[#allocation4 + $0x5b4] sm:$0xf]
    %v452 = vld [vmem:[#allocation4 + $0x5b8] sm:$0xf]
    %v453 = vld [vmem:[#allocation4 + $0x5bc] sm:$0xf]
    %v454 = vld [vmem:[#allocation4 + $0x5c0] sm:$0xf]
    %v455 = vld [vmem:[#allocation4 + $0x5c4] sm:$0xf]
    %v456 = vld [vmem:[#allocation4 + $0x5c8] sm:$0xf]
    %v457 = vld [vmem:[#allocation4 + $0x5cc] sm:$0xf]
    %v458 = vld [vmem:[#allocation4 + $0x5d0] sm:$0xf]
    %v459 = vld [vmem:[#allocation4 + $0x5d4] sm:$0xf]
    %v460 = vld [vmem:[#allocation4 + $0x5d8] sm:$0xf]
    %v461 = vld [vmem:[#allocation4 + $0x5dc] sm:$0xf]
    %v462 = vld [vmem:[#allocation4 + $0x5e0] sm:$0xf]
    %v463 = vld [vmem:[#allocation4 + $0x5e4] sm:$0xf]
    %v464 = vld [vmem:[#allocation4 + $0x5e8] sm:$0xf]
    %v465 = vld [vmem:[#allocation4 + $0x5ec] sm:$0xf]
    %v466 = vld [vmem:[#allocation4 + $0x5f0] sm:$0xf]
    %v467 = vld [vmem:[#allocation4 + $0x5f4] sm:$0xf]
    %v468 = vld [vmem:[#allocation4 + $0x5f8] sm:$0xf]
    %v469 = vld [vmem:[#allocation4 + $0x5fc] sm:$0xf]
    %v470 = vld [vmem:[%s2] sm:$0x1]
    %v472 = vlaneseq
    %v473 = vshrl.u32 %v472, 7
    %v474 = vsub.s32 0, %v473
    %v475 = vrot.slane %v470, %v474
    %v501 = vunpack.c.l.b16 %v62
    %v502 = vunpack.c.h.b16 %v62
    %v503 = vunpack.c.l.b16 %v63
    %v504 = vunpack.c.h.b16 %v63
    %v505 = vunpack.c.l.b16 %v64
    %v506 = vunpack.c.h.b16 %v64
    %v507 = vunpack.c.l.b16 %v65
    %v508 = vunpack.c.h.b16 %v65
    %v509 = vunpack.c.l.b16 %v66
    %v510 = vunpack.c.h.b16 %v66
    %v511 = vunpack.c.l.b16 %v67
    %v512 = vunpack.c.h.b16 %v67
    %v513 = vunpack.c.l.b16 %v68
    %v514 = vunpack.c.h.b16 %v68
    %v515 = vunpack.c.l.b16 %v69
    %v516 = vunpack.c.h.b16 %v69
    %v517 = vunpack.c.l.b16 %v70
    %v518 = vunpack.c.h.b16 %v70
    %v519 = vunpack.c.l.b16 %v71
    %v520 = vunpack.c.h.b16 %v71
    %v521 = vunpack.c.l.b16 %v72
    %v522 = vunpack.c.h.b16 %v72
    %v523 = vunpack.c.l.b16 %v73
    %v524 = vunpack.c.h.b16 %v73
    %v525 = vunpack.c.l.b16 %v74
    %v526 = vunpack.c.h.b16 %v74
    %v527 = vunpack.c.l.b16 %v75
    %v528 = vunpack.c.h.b16 %v75
    %v529 = vunpack.c.l.b16 %v76
    %v530 = vunpack.c.h.b16 %v76
    %v531 = vunpack.c.l.b16 %v77
    %v532 = vunpack.c.h.b16 %v77
    %v533 = vunpack.c.l.b16 %v78
    %v534 = vunpack.c.h.b16 %v78
    %v535 = vunpack.c.l.b16 %v79
    %v536 = vunpack.c.h.b16 %v79
    %v537 = vunpack.c.l.b16 %v80
    %v538 = vunpack.c.h.b16 %v80
    %v539 = vunpack.c.l.b16 %v81
    %v540 = vunpack.c.h.b16 %v81
    %v541 = vunpack.c.l.b16 %v82
    %v542 = vunpack.c.h.b16 %v82
    %v543 = vunpack.c.l.b16 %v83
    %v544 = vunpack.c.h.b16 %v83
    %v545 = vunpack.c.l.b16 %v84
    %v546 = vunpack.c.h.b16 %v84
    %v547 = vunpack.c.l.b16 %v85
    %v548 = vunpack.c.h.b16 %v85
    %v549 = vpack.c.b16 %v525, %v501
    %v550 = vpack.c.b16 %v526, %v502
    %v551 = vpack.c.b16 %v527, %v503
    %v552 = vpack.c.b16 %v528, %v504
    %v553 = vpack.c.b16 %v529, %v505
    %v554 = vpack.c.b16 %v530, %v506
    %v555 = vpack.c.b16 %v531, %v507
    %v556 = vpack.c.b16 %v532, %v508
    %v557 = vpack.c.b16 %v533, %v509
    %v558 = vpack.c.b16 %v534, %v510
    %v559 = vpack.c.b16 %v535, %v511
    %v560 = vpack.c.b16 %v536, %v512
    %v561 = vpack.c.b16 %v537, %v513
    %v562 = vpack.c.b16 %v538, %v514
    %v563 = vpack.c.b16 %v539, %v515
    %v564 = vpack.c.b16 %v540, %v516
    %v565 = vpack.c.b16 %v541, %v517
    %v566 = vpack.c.b16 %v542, %v518
    %v567 = vpack.c.b16 %v543, %v519
    %v568 = vpack.c.b16 %v544, %v520
    %v569 = vpack.c.b16 %v545, %v521
    %v570 = vpack.c.b16 %v546, %v522
    %v571 = vpack.c.b16 %v547, %v523
    %v572 = vpack.c.b16 %v548, %v524
    %v981 = vunpack.c.l.b16 %v86
    %v982 = vunpack.c.l.b16 %v87
    %v983 = vunpack.c.l.b16 %v88
    %v984 = vunpack.c.l.b16 %v89
    %v985 = vunpack.c.l.b16 %v90
    %v986 = vunpack.c.l.b16 %v91
    %v987 = vunpack.c.l.b16 %v92
    %v988 = vunpack.c.l.b16 %v93
    %v989 = vunpack.c.l.b16 %v94
    %v990 = vunpack.c.l.b16 %v95
    %v991 = vunpack.c.l.b16 %v96
    %v992 = vunpack.c.l.b16 %v97
    %v993 = vunpack.c.l.b16 %v98
    %v994 = vunpack.c.l.b16 %v99
    %v995 = vunpack.c.l.b16 %v100
    %v996 = vunpack.c.l.b16 %v101
    %v997 = vunpack.c.l.b16 %v102
    %v998 = vunpack.c.l.b16 %v103
    %v999 = vunpack.c.l.b16 %v104
    %v1000 = vunpack.c.l.b16 %v105
    %v1001 = vunpack.c.l.b16 %v106
    %v1002 = vunpack.c.l.b16 %v107
    %v1003 = vunpack.c.l.b16 %v108
    %v1004 = vunpack.c.l.b16 %v109
    %v1005 = vunpack.c.l.b16 %v110
    %v1006 = vunpack.c.l.b16 %v111
    %v1007 = vunpack.c.l.b16 %v112
    %v1008 = vunpack.c.l.b16 %v113
    %v1009 = vunpack.c.l.b16 %v114
    %v1010 = vunpack.c.l.b16 %v115
    %v1011 = vunpack.c.l.b16 %v116
    %v1012 = vunpack.c.l.b16 %v117
    %v1013 = vunpack.c.l.b16 %v118
    %v1014 = vunpack.c.l.b16 %v119
    %v1015 = vunpack.c.l.b16 %v120
    %v1016 = vunpack.c.l.b16 %v121
    %v1017 = vunpack.c.l.b16 %v122
    %v1018 = vunpack.c.l.b16 %v123
    %v1019 = vunpack.c.l.b16 %v124
    %v1020 = vunpack.c.l.b16 %v125
    %v1021 = vunpack.c.l.b16 %v126
    %v1022 = vunpack.c.l.b16 %v127
    %v1023 = vunpack.c.l.b16 %v128
    %v1024 = vunpack.c.l.b16 %v129
    %v1025 = vunpack.c.l.b16 %v130
    %v1026 = vunpack.c.l.b16 %v131
    %v1027 = vunpack.c.l.b16 %v132
    %v1028 = vunpack.c.l.b16 %v133
    %v1029 = vunpack.c.l.b16 %v134
    %v1030 = vunpack.c.l.b16 %v135
    %v1031 = vunpack.c.l.b16 %v136
    %v1032 = vunpack.c.l.b16 %v137
    %v1033 = vunpack.c.l.b16 %v138
    %v1034 = vunpack.c.l.b16 %v139
    %v1035 = vunpack.c.l.b16 %v140
    %v1036 = vunpack.c.l.b16 %v141
    %v1037 = vunpack.c.l.b16 %v142
    %v1038 = vunpack.c.l.b16 %v143
    %v1039 = vunpack.c.l.b16 %v144
    %v1040 = vunpack.c.l.b16 %v145
    %v1041 = vunpack.c.l.b16 %v146
    %v1042 = vunpack.c.l.b16 %v147
    %v1043 = vunpack.c.l.b16 %v148
    %v1044 = vunpack.c.l.b16 %v149
    %v1045 = vunpack.c.l.b16 %v150
    %v1046 = vunpack.c.l.b16 %v151
    %v1047 = vunpack.c.l.b16 %v152
    %v1048 = vunpack.c.l.b16 %v153
    %v1049 = vunpack.c.l.b16 %v154
    %v1050 = vunpack.c.l.b16 %v155
    %v1051 = vunpack.c.l.b16 %v156
    %v1052 = vunpack.c.l.b16 %v157
    %v1053 = vunpack.c.l.b16 %v158
    %v1054 = vunpack.c.l.b16 %v159
    %v1055 = vunpack.c.l.b16 %v160
    %v1056 = vunpack.c.l.b16 %v161
    %v1057 = vunpack.c.l.b16 %v162
    %v1058 = vunpack.c.l.b16 %v163
    %v1059 = vunpack.c.l.b16 %v164
    %v1060 = vunpack.c.l.b16 %v165
    %v1061 = vunpack.c.l.b16 %v166
    %v1062 = vunpack.c.l.b16 %v167
    %v1063 = vunpack.c.l.b16 %v168
    %v1064 = vunpack.c.l.b16 %v169
    %v1065 = vunpack.c.l.b16 %v170
    %v1066 = vunpack.c.l.b16 %v171
    %v1067 = vunpack.c.l.b16 %v172
    %v1068 = vunpack.c.l.b16 %v173
    %v1069 = vunpack.c.l.b16 %v174
    %v1070 = vunpack.c.l.b16 %v175
    %v1071 = vunpack.c.l.b16 %v176
    %v1072 = vunpack.c.l.b16 %v177
    %v1073 = vunpack.c.l.b16 %v178
    %v1074 = vunpack.c.l.b16 %v179
    %v1075 = vunpack.c.l.b16 %v180
    %v1076 = vunpack.c.l.b16 %v181
    %v1077 = vunpack.c.l.b16 %v182
    %v1078 = vunpack.c.l.b16 %v183
    %v1079 = vunpack.c.l.b16 %v184
    %v1080 = vunpack.c.l.b16 %v185
    %v1081 = vunpack.c.l.b16 %v186
    %v1082 = vunpack.c.l.b16 %v187
    %v1083 = vunpack.c.l.b16 %v188
    %v1084 = vunpack.c.l.b16 %v189
    %v1085 = vunpack.c.l.b16 %v190
    %v1086 = vunpack.c.l.b16 %v191
    %v1087 = vunpack.c.l.b16 %v192
    %v1088 = vunpack.c.l.b16 %v193
    %v1089 = vunpack.c.l.b16 %v194
    %v1090 = vunpack.c.l.b16 %v195
    %v1091 = vunpack.c.l.b16 %v196
    %v1092 = vunpack.c.l.b16 %v197
    %v1093 = vunpack.c.l.b16 %v198
    %v1094 = vunpack.c.l.b16 %v199
    %v1095 = vunpack.c.l.b16 %v200
    %v1096 = vunpack.c.l.b16 %v201
    %v1097 = vunpack.c.l.b16 %v202
    %v1098 = vunpack.c.l.b16 %v203
    %v1099 = vunpack.c.l.b16 %v204
    %v1100 = vunpack.c.l.b16 %v205
    %v1101 = vunpack.c.l.b16 %v206
    %v1102 = vunpack.c.l.b16 %v207
    %v1103 = vunpack.c.l.b16 %v208
    %v1104 = vunpack.c.l.b16 %v209
    %v1105 = vunpack.c.l.b16 %v210
    %v1106 = vunpack.c.l.b16 %v211
    %v1107 = vunpack.c.l.b16 %v212
    %v1108 = vunpack.c.l.b16 %v213
    %v1109 = vunpack.c.l.b16 %v214
    %v1110 = vunpack.c.l.b16 %v215
    %v1111 = vunpack.c.l.b16 %v216
    %v1112 = vunpack.c.l.b16 %v217
    %v1113 = vunpack.c.l.b16 %v218
    %v1114 = vunpack.c.l.b16 %v219
    %v1115 = vunpack.c.l.b16 %v220
    %v1116 = vunpack.c.l.b16 %v221
    %v1117 = vunpack.c.l.b16 %v222
    %v1118 = vunpack.c.l.b16 %v223
    %v1119 = vunpack.c.l.b16 %v224
    %v1120 = vunpack.c.l.b16 %v225
    %v1121 = vunpack.c.l.b16 %v226
    %v1122 = vunpack.c.l.b16 %v227
    %v1123 = vunpack.c.l.b16 %v228
    %v1124 = vunpack.c.l.b16 %v229
    %v1125 = vunpack.c.l.b16 %v230
    %v1126 = vunpack.c.l.b16 %v231
    %v1127 = vunpack.c.l.b16 %v232
    %v1128 = vunpack.c.l.b16 %v233
    %v1129 = vunpack.c.l.b16 %v234
    %v1130 = vunpack.c.l.b16 %v235
    %v1131 = vunpack.c.l.b16 %v236
    %v1132 = vunpack.c.l.b16 %v237
    %v1133 = vunpack.c.l.b16 %v238
    %v1134 = vunpack.c.l.b16 %v239
    %v1135 = vunpack.c.l.b16 %v240
    %v1136 = vunpack.c.l.b16 %v241
    %v1137 = vunpack.c.l.b16 %v242
    %v1138 = vunpack.c.l.b16 %v243
    %v1139 = vunpack.c.l.b16 %v244
    %v1140 = vunpack.c.l.b16 %v245
    %v1141 = vunpack.c.l.b16 %v246
    %v1142 = vunpack.c.l.b16 %v247
    %v1143 = vunpack.c.l.b16 %v248
    %v1144 = vunpack.c.l.b16 %v249
    %v1145 = vunpack.c.l.b16 %v250
    %v1146 = vunpack.c.l.b16 %v251
    %v1147 = vunpack.c.l.b16 %v252
    %v1148 = vunpack.c.l.b16 %v253
    %v1149 = vunpack.c.l.b16 %v254
    %v1150 = vunpack.c.l.b16 %v255
    %v1151 = vunpack.c.l.b16 %v256
    %v1152 = vunpack.c.l.b16 %v257
    %v1153 = vunpack.c.l.b16 %v258
    %v1154 = vunpack.c.l.b16 %v259
    %v1155 = vunpack.c.l.b16 %v260
    %v1156 = vunpack.c.l.b16 %v261
    %v1157 = vunpack.c.l.b16 %v262
    %v1158 = vunpack.c.l.b16 %v263
    %v1159 = vunpack.c.l.b16 %v264
    %v1160 = vunpack.c.l.b16 %v265
    %v1161 = vunpack.c.l.b16 %v266
    %v1162 = vunpack.c.l.b16 %v267
    %v1163 = vunpack.c.l.b16 %v268
    %v1164 = vunpack.c.l.b16 %v269
    %v1165 = vunpack.c.l.b16 %v270
    %v1166 = vunpack.c.l.b16 %v271
    %v1167 = vunpack.c.l.b16 %v272
    %v1168 = vunpack.c.l.b16 %v273
    %v1169 = vunpack.c.l.b16 %v274
    %v1170 = vunpack.c.l.b16 %v275
    %v1171 = vunpack.c.l.b16 %v276
    %v1172 = vunpack.c.l.b16 %v277
    %v1173 = vunpack.c.l.b16 %v278
    %v1174 = vunpack.c.l.b16 %v279
    %v1175 = vunpack.c.l.b16 %v280
    %v1176 = vunpack.c.l.b16 %v281
    %v1177 = vunpack.c.l.b16 %v282
    %v1178 = vunpack.c.l.b16 %v283
    %v1179 = vunpack.c.l.b16 %v284
    %v1180 = vunpack.c.l.b16 %v285
    %v1181 = vunpack.c.l.b16 %v286
    %v1182 = vunpack.c.l.b16 %v287
    %v1183 = vunpack.c.l.b16 %v288
    %v1184 = vunpack.c.l.b16 %v289
    %v1185 = vunpack.c.l.b16 %v290
    %v1186 = vunpack.c.l.b16 %v291
    %v1187 = vunpack.c.l.b16 %v292
    %v1188 = vunpack.c.l.b16 %v293
    %v1189 = vunpack.c.l.b16 %v294
    %v1190 = vunpack.c.l.b16 %v295
    %v1191 = vunpack.c.l.b16 %v296
    %v1192 = vunpack.c.l.b16 %v297
    %v1193 = vunpack.c.l.b16 %v298
    %v1194 = vunpack.c.l.b16 %v299
    %v1195 = vunpack.c.l.b16 %v300
    %v1196 = vunpack.c.l.b16 %v301
    %v1197 = vunpack.c.l.b16 %v302
    %v1198 = vunpack.c.l.b16 %v303
    %v1199 = vunpack.c.l.b16 %v304
    %v1200 = vunpack.c.l.b16 %v305
    %v1201 = vunpack.c.l.b16 %v306
    %v1202 = vunpack.c.l.b16 %v307
    %v1203 = vunpack.c.l.b16 %v308
    %v1204 = vunpack.c.l.b16 %v309
    %v1205 = vunpack.c.l.b16 %v310
    %v1206 = vunpack.c.l.b16 %v311
    %v1207 = vunpack.c.l.b16 %v312
    %v1208 = vunpack.c.l.b16 %v313
    %v1209 = vunpack.c.l.b16 %v314
    %v1210 = vunpack.c.l.b16 %v315
    %v1211 = vunpack.c.l.b16 %v316
    %v1212 = vunpack.c.l.b16 %v317
    %v1213 = vunpack.c.l.b16 %v318
    %v1214 = vunpack.c.l.b16 %v319
    %v1215 = vunpack.c.l.b16 %v320
    %v1216 = vunpack.c.l.b16 %v321
    %v1217 = vunpack.c.l.b16 %v322
    %v1218 = vunpack.c.l.b16 %v323
    %v1219 = vunpack.c.l.b16 %v324
    %v1220 = vunpack.c.l.b16 %v325
    %v1221 = vunpack.c.l.b16 %v326
    %v1222 = vunpack.c.l.b16 %v327
    %v1223 = vunpack.c.l.b16 %v328
    %v1224 = vunpack.c.l.b16 %v329
    %v1225 = vunpack.c.l.b16 %v330
    %v1226 = vunpack.c.l.b16 %v331
    %v1227 = vunpack.c.l.b16 %v332
    %v1228 = vunpack.c.l.b16 %v333
    %v1229 = vunpack.c.l.b16 %v334
    %v1230 = vunpack.c.l.b16 %v335
    %v1231 = vunpack.c.l.b16 %v336
    %v1232 = vunpack.c.l.b16 %v337
    %v1233 = vunpack.c.l.b16 %v338
    %v1234 = vunpack.c.l.b16 %v339
    %v1235 = vunpack.c.l.b16 %v340
    %v1236 = vunpack.c.l.b16 %v341
    %v1237 = vunpack.c.l.b16 %v342
    %v1238 = vunpack.c.l.b16 %v343
    %v1239 = vunpack.c.l.b16 %v344
    %v1240 = vunpack.c.l.b16 %v345
    %v1241 = vunpack.c.l.b16 %v346
    %v1242 = vunpack.c.l.b16 %v347
    %v1243 = vunpack.c.l.b16 %v348
    %v1244 = vunpack.c.l.b16 %v349
    %v1245 = vunpack.c.l.b16 %v350
    %v1246 = vunpack.c.l.b16 %v351
    %v1247 = vunpack.c.l.b16 %v352
    %v1248 = vunpack.c.l.b16 %v353
    %v1249 = vunpack.c.l.b16 %v354
    %v1250 = vunpack.c.l.b16 %v355
    %v1251 = vunpack.c.l.b16 %v356
    %v1252 = vunpack.c.l.b16 %v357
    %v1253 = vunpack.c.l.b16 %v358
    %v1254 = vunpack.c.l.b16 %v359
    %v1255 = vunpack.c.l.b16 %v360
    %v1256 = vunpack.c.l.b16 %v361
    %v1257 = vunpack.c.l.b16 %v362
    %v1258 = vunpack.c.l.b16 %v363
    %v1259 = vunpack.c.l.b16 %v364
    %v1260 = vunpack.c.l.b16 %v365
    %v1261 = vunpack.c.l.b16 %v366
    %v1262 = vunpack.c.l.b16 %v367
    %v1263 = vunpack.c.l.b16 %v368
    %v1264 = vunpack.c.l.b16 %v369
    %v1265 = vunpack.c.l.b16 %v370
    %v1266 = vunpack.c.l.b16 %v371
    %v1267 = vunpack.c.l.b16 %v372
    %v1268 = vunpack.c.l.b16 %v373
    %v1269 = vunpack.c.l.b16 %v374
    %v1270 = vunpack.c.l.b16 %v375
    %v1271 = vunpack.c.l.b16 %v376
    %v1272 = vunpack.c.l.b16 %v377
    %v1273 = vunpack.c.l.b16 %v378
    %v1274 = vunpack.c.l.b16 %v379
    %v1275 = vunpack.c.l.b16 %v380
    %v1276 = vunpack.c.l.b16 %v381
    %v1277 = vunpack.c.l.b16 %v382
    %v1278 = vunpack.c.l.b16 %v383
    %v1279 = vunpack.c.l.b16 %v384
    %v1280 = vunpack.c.l.b16 %v385
    %v1281 = vunpack.c.l.b16 %v386
    %v1282 = vunpack.c.l.b16 %v387
    %v1283 = vunpack.c.l.b16 %v388
    %v1284 = vunpack.c.l.b16 %v389
    %v1285 = vunpack.c.l.b16 %v390
    %v1286 = vunpack.c.l.b16 %v391
    %v1287 = vunpack.c.l.b16 %v392
    %v1288 = vunpack.c.l.b16 %v393
    %v1289 = vunpack.c.l.b16 %v394
    %v1290 = vunpack.c.l.b16 %v395
    %v1291 = vunpack.c.l.b16 %v396
    %v1292 = vunpack.c.l.b16 %v397
    %v1293 = vunpack.c.l.b16 %v398
    %v1294 = vunpack.c.l.b16 %v399
    %v1295 = vunpack.c.l.b16 %v400
    %v1296 = vunpack.c.l.b16 %v401
    %v1297 = vunpack.c.l.b16 %v402
    %v1298 = vunpack.c.l.b16 %v403
    %v1299 = vunpack.c.l.b16 %v404
    %v1300 = vunpack.c.l.b16 %v405
    %v1301 = vunpack.c.l.b16 %v406
    %v1302 = vunpack.c.l.b16 %v407
    %v1303 = vunpack.c.l.b16 %v408
    %v1304 = vunpack.c.l.b16 %v409
    %v1305 = vunpack.c.l.b16 %v410
    %v1306 = vunpack.c.l.b16 %v411
    %v1307 = vunpack.c.l.b16 %v412
    %v1308 = vunpack.c.l.b16 %v413
    %v1309 = vunpack.c.l.b16 %v414
    %v1310 = vunpack.c.l.b16 %v415
    %v1311 = vunpack.c.l.b16 %v416
    %v1312 = vunpack.c.l.b16 %v417
    %v1313 = vunpack.c.l.b16 %v418
    %v1314 = vunpack.c.l.b16 %v419
    %v1315 = vunpack.c.l.b16 %v420
    %v1316 = vunpack.c.l.b16 %v421
    %v1317 = vunpack.c.l.b16 %v422
    %v1318 = vunpack.c.l.b16 %v423
    %v1319 = vunpack.c.l.b16 %v424
    %v1320 = vunpack.c.l.b16 %v425
    %v1321 = vunpack.c.l.b16 %v426
    %v1322 = vunpack.c.l.b16 %v427
    %v1323 = vunpack.c.l.b16 %v428
    %v1324 = vunpack.c.l.b16 %v429
    %v1325 = vunpack.c.l.b16 %v430
    %v1326 = vunpack.c.l.b16 %v431
    %v1327 = vunpack.c.l.b16 %v432
    %v1328 = vunpack.c.l.b16 %v433
    %v1329 = vunpack.c.l.b16 %v434
    %v1330 = vunpack.c.l.b16 %v435
    %v1331 = vunpack.c.l.b16 %v436
    %v1332 = vunpack.c.l.b16 %v437
    %v1333 = vunpack.c.l.b16 %v438
    %v1334 = vunpack.c.l.b16 %v439
    %v1335 = vunpack.c.l.b16 %v440
    %v1336 = vunpack.c.l.b16 %v441
    %v1337 = vunpack.c.l.b16 %v442
    %v1338 = vunpack.c.l.b16 %v443
    %v1339 = vunpack.c.l.b16 %v444
    %v1340 = vunpack.c.l.b16 %v445
    %v1341 = vunpack.c.l.b16 %v446
    %v1342 = vunpack.c.l.b16 %v447
    %v1343 = vunpack.c.l.b16 %v448
    %v1344 = vunpack.c.l.b16 %v449
    %v1345 = vunpack.c.l.b16 %v450
    %v1346 = vunpack.c.l.b16 %v451
    %v1347 = vunpack.c.l.b16 %v452
    %v1348 = vunpack.c.l.b16 %v453
    %v1349 = vunpack.c.l.b16 %v454
    %v1350 = vunpack.c.l.b16 %v455
    %v1351 = vunpack.c.l.b16 %v456
    %v1352 = vunpack.c.l.b16 %v457
    %v1353 = vunpack.c.l.b16 %v458
    %v1354 = vunpack.c.l.b16 %v459
    %v1355 = vunpack.c.l.b16 %v460
    %v1356 = vunpack.c.l.b16 %v461
    %v1357 = vunpack.c.l.b16 %v462
    %v1358 = vunpack.c.l.b16 %v463
    %v1359 = vunpack.c.l.b16 %v464
    %v1360 = vunpack.c.l.b16 %v465
    %v1361 = vunpack.c.l.b16 %v466
    %v1362 = vunpack.c.l.b16 %v467
    %v1363 = vunpack.c.l.b16 %v468
    %v1364 = vunpack.c.l.b16 %v469
    %v1365 = vpack.c.b16 %v982, %v981
    %v1366 = vpack.c.b16 %v984, %v983
    %v1367 = vpack.c.b16 %v986, %v985
    %v1368 = vpack.c.b16 %v988, %v987
    %v1369 = vpack.c.b16 %v990, %v989
    %v1370 = vpack.c.b16 %v992, %v991
    %v1371 = vpack.c.b16 %v994, %v993
    %v1372 = vpack.c.b16 %v996, %v995
    %v1373 = vpack.c.b16 %v998, %v997
    %v1374 = vpack.c.b16 %v1000, %v999
    %v1375 = vpack.c.b16 %v1002, %v1001
    %v1376 = vpack.c.b16 %v1004, %v1003
    %v1377 = vpack.c.b16 %v1006, %v1005
    %v1378 = vpack.c.b16 %v1008, %v1007
    %v1379 = vpack.c.b16 %v1010, %v1009
    %v1380 = vpack.c.b16 %v1012, %v1011
    %v1381 = vpack.c.b16 %v1014, %v1013
    %v1382 = vpack.c.b16 %v1016, %v1015
    %v1383 = vpack.c.b16 %v1018, %v1017
    %v1384 = vpack.c.b16 %v1020, %v1019
    %v1385 = vpack.c.b16 %v1022, %v1021
    %v1386 = vpack.c.b16 %v1024, %v1023
    %v1387 = vpack.c.b16 %v1026, %v1025
    %v1388 = vpack.c.b16 %v1028, %v1027
    %v1389 = vpack.c.b16 %v1030, %v1029
    %v1390 = vpack.c.b16 %v1032, %v1031
    %v1391 = vpack.c.b16 %v1034, %v1033
    %v1392 = vpack.c.b16 %v1036, %v1035
    %v1393 = vpack.c.b16 %v1038, %v1037
    %v1394 = vpack.c.b16 %v1040, %v1039
    %v1395 = vpack.c.b16 %v1042, %v1041
    %v1396 = vpack.c.b16 %v1044, %v1043
    %v1397 = vpack.c.b16 %v1046, %v1045
    %v1398 = vpack.c.b16 %v1048, %v1047
    %v1399 = vpack.c.b16 %v1050, %v1049
    %v1400 = vpack.c.b16 %v1052, %v1051
    %v1401 = vpack.c.b16 %v1054, %v1053
    %v1402 = vpack.c.b16 %v1056, %v1055
    %v1403 = vpack.c.b16 %v1058, %v1057
    %v1404 = vpack.c.b16 %v1060, %v1059
    %v1405 = vpack.c.b16 %v1062, %v1061
    %v1406 = vpack.c.b16 %v1064, %v1063
    %v1407 = vpack.c.b16 %v1066, %v1065
    %v1408 = vpack.c.b16 %v1068, %v1067
    %v1409 = vpack.c.b16 %v1070, %v1069
    %v1410 = vpack.c.b16 %v1072, %v1071
    %v1411 = vpack.c.b16 %v1074, %v1073
    %v1412 = vpack.c.b16 %v1076, %v1075
    %v1413 = vpack.c.b16 %v1078, %v1077
    %v1414 = vpack.c.b16 %v1080, %v1079
    %v1415 = vpack.c.b16 %v1082, %v1081
    %v1416 = vpack.c.b16 %v1084, %v1083
    %v1417 = vpack.c.b16 %v1086, %v1085
    %v1418 = vpack.c.b16 %v1088, %v1087
    %v1419 = vpack.c.b16 %v1090, %v1089
    %v1420 = vpack.c.b16 %v1092, %v1091
    %v1421 = vpack.c.b16 %v1094, %v1093
    %v1422 = vpack.c.b16 %v1096, %v1095
    %v1423 = vpack.c.b16 %v1098, %v1097
    %v1424 = vpack.c.b16 %v1100, %v1099
    %v1425 = vpack.c.b16 %v1102, %v1101
    %v1426 = vpack.c.b16 %v1104, %v1103
    %v1427 = vpack.c.b16 %v1106, %v1105
    %v1428 = vpack.c.b16 %v1108, %v1107
    %v1429 = vpack.c.b16 %v1110, %v1109
    %v1430 = vpack.c.b16 %v1112, %v1111
    %v1431 = vpack.c.b16 %v1114, %v1113
    %v1432 = vpack.c.b16 %v1116, %v1115
    %v1433 = vpack.c.b16 %v1118, %v1117
    %v1434 = vpack.c.b16 %v1120, %v1119
    %v1435 = vpack.c.b16 %v1122, %v1121
    %v1436 = vpack.c.b16 %v1124, %v1123
    %v1437 = vpack.c.b16 %v1126, %v1125
    %v1438 = vpack.c.b16 %v1128, %v1127
    %v1439 = vpack.c.b16 %v1130, %v1129
    %v1440 = vpack.c.b16 %v1132, %v1131
    %v1441 = vpack.c.b16 %v1134, %v1133
    %v1442 = vpack.c.b16 %v1136, %v1135
    %v1443 = vpack.c.b16 %v1138, %v1137
    %v1444 = vpack.c.b16 %v1140, %v1139
    %v1445 = vpack.c.b16 %v1142, %v1141
    %v1446 = vpack.c.b16 %v1144, %v1143
    %v1447 = vpack.c.b16 %v1146, %v1145
    %v1448 = vpack.c.b16 %v1148, %v1147
    %v1449 = vpack.c.b16 %v1150, %v1149
    %v1450 = vpack.c.b16 %v1152, %v1151
    %v1451 = vpack.c.b16 %v1154, %v1153
    %v1452 = vpack.c.b16 %v1156, %v1155
    %v1453 = vpack.c.b16 %v1158, %v1157
    %v1454 = vpack.c.b16 %v1160, %v1159
    %v1455 = vpack.c.b16 %v1162, %v1161
    %v1456 = vpack.c.b16 %v1164, %v1163
    %v1457 = vpack.c.b16 %v1166, %v1165
    %v1458 = vpack.c.b16 %v1168, %v1167
    %v1459 = vpack.c.b16 %v1170, %v1169
    %v1460 = vpack.c.b16 %v1172, %v1171
    %v1461 = vpack.c.b16 %v1174, %v1173
    %v1462 = vpack.c.b16 %v1176, %v1175
    %v1463 = vpack.c.b16 %v1178, %v1177
    %v1464 = vpack.c.b16 %v1180, %v1179
    %v1465 = vpack.c.b16 %v1182, %v1181
    %v1466 = vpack.c.b16 %v1184, %v1183
    %v1467 = vpack.c.b16 %v1186, %v1185
    %v1468 = vpack.c.b16 %v1188, %v1187
    %v1469 = vpack.c.b16 %v1190, %v1189
    %v1470 = vpack.c.b16 %v1192, %v1191
    %v1471 = vpack.c.b16 %v1194, %v1193
    %v1472 = vpack.c.b16 %v1196, %v1195
    %v1473 = vpack.c.b16 %v1198, %v1197
    %v1474 = vpack.c.b16 %v1200, %v1199
    %v1475 = vpack.c.b16 %v1202, %v1201
    %v1476 = vpack.c.b16 %v1204, %v1203
    %v1477 = vpack.c.b16 %v1206, %v1205
    %v1478 = vpack.c.b16 %v1208, %v1207
    %v1479 = vpack.c.b16 %v1210, %v1209
    %v1480 = vpack.c.b16 %v1212, %v1211
    %v1481 = vpack.c.b16 %v1214, %v1213
    %v1482 = vpack.c.b16 %v1216, %v1215
    %v1483 = vpack.c.b16 %v1218, %v1217
    %v1484 = vpack.c.b16 %v1220, %v1219
    %v1485 = vpack.c.b16 %v1222, %v1221
    %v1486 = vpack.c.b16 %v1224, %v1223
    %v1487 = vpack.c.b16 %v1226, %v1225
    %v1488 = vpack.c.b16 %v1228, %v1227
    %v1489 = vpack.c.b16 %v1230, %v1229
    %v1490 = vpack.c.b16 %v1232, %v1231
    %v1491 = vpack.c.b16 %v1234, %v1233
    %v1492 = vpack.c.b16 %v1236, %v1235
    %v1493 = vpack.c.b16 %v1238, %v1237
    %v1494 = vpack.c.b16 %v1240, %v1239
    %v1495 = vpack.c.b16 %v1242, %v1241
    %v1496 = vpack.c.b16 %v1244, %v1243
    %v1497 = vpack.c.b16 %v1246, %v1245
    %v1498 = vpack.c.b16 %v1248, %v1247
    %v1499 = vpack.c.b16 %v1250, %v1249
    %v1500 = vpack.c.b16 %v1252, %v1251
    %v1501 = vpack.c.b16 %v1254, %v1253
    %v1502 = vpack.c.b16 %v1256, %v1255
    %v1503 = vpack.c.b16 %v1258, %v1257
    %v1504 = vpack.c.b16 %v1260, %v1259
    %v1505 = vpack.c.b16 %v1262, %v1261
    %v1506 = vpack.c.b16 %v1264, %v1263
    %v1507 = vpack.c.b16 %v1266, %v1265
    %v1508 = vpack.c.b16 %v1268, %v1267
    %v1509 = vpack.c.b16 %v1270, %v1269
    %v1510 = vpack.c.b16 %v1272, %v1271
    %v1511 = vpack.c.b16 %v1274, %v1273
    %v1512 = vpack.c.b16 %v1276, %v1275
    %v1513 = vpack.c.b16 %v1278, %v1277
    %v1514 = vpack.c.b16 %v1280, %v1279
    %v1515 = vpack.c.b16 %v1282, %v1281
    %v1516 = vpack.c.b16 %v1284, %v1283
    %v1517 = vpack.c.b16 %v1286, %v1285
    %v1518 = vpack.c.b16 %v1288, %v1287
    %v1519 = vpack.c.b16 %v1290, %v1289
    %v1520 = vpack.c.b16 %v1292, %v1291
    %v1521 = vpack.c.b16 %v1294, %v1293
    %v1522 = vpack.c.b16 %v1296, %v1295
    %v1523 = vpack.c.b16 %v1298, %v1297
    %v1524 = vpack.c.b16 %v1300, %v1299
    %v1525 = vpack.c.b16 %v1302, %v1301
    %v1526 = vpack.c.b16 %v1304, %v1303
    %v1527 = vpack.c.b16 %v1306, %v1305
    %v1528 = vpack.c.b16 %v1308, %v1307
    %v1529 = vpack.c.b16 %v1310, %v1309
    %v1530 = vpack.c.b16 %v1312, %v1311
    %v1531 = vpack.c.b16 %v1314, %v1313
    %v1532 = vpack.c.b16 %v1316, %v1315
    %v1533 = vpack.c.b16 %v1318, %v1317
    %v1534 = vpack.c.b16 %v1320, %v1319
    %v1535 = vpack.c.b16 %v1322, %v1321
    %v1536 = vpack.c.b16 %v1324, %v1323
    %v1537 = vpack.c.b16 %v1326, %v1325
    %v1538 = vpack.c.b16 %v1328, %v1327
    %v1539 = vpack.c.b16 %v1330, %v1329
    %v1540 = vpack.c.b16 %v1332, %v1331
    %v1541 = vpack.c.b16 %v1334, %v1333
    %v1542 = vpack.c.b16 %v1336, %v1335
    %v1543 = vpack.c.b16 %v1338, %v1337
    %v1544 = vpack.c.b16 %v1340, %v1339
    %v1545 = vpack.c.b16 %v1342, %v1341
    %v1546 = vpack.c.b16 %v1344, %v1343
    %v1547 = vpack.c.b16 %v1346, %v1345
    %v1548 = vpack.c.b16 %v1348, %v1347
    %v1549 = vpack.c.b16 %v1350, %v1349
    %v1550 = vpack.c.b16 %v1352, %v1351
    %v1551 = vpack.c.b16 %v1354, %v1353
    %v1552 = vpack.c.b16 %v1356, %v1355
    %v1553 = vpack.c.b16 %v1358, %v1357
    %v1554 = vpack.c.b16 %v1360, %v1359
    %v1555 = vpack.c.b16 %v1362, %v1361
    %v1556 = vpack.c.b16 %v1364, %v1363
    %1749 = vmatprep.subr.bf16.mxu0 0
    %1750 = vmatpush1.bf16.msra.mxu0 %v1365
    %1751 = vmatprep.subr.bf16.mxu0 0
    %1752 = vmatpush1.bf16.msra.mxu0 %v1366
    %1753 = vmatprep.subr.bf16.mxu0 0
    %1754 = vmatpush1.bf16.msra.mxu0 %v1367
    %1755 = vmatprep.subr.bf16.mxu0 0
    %1756 = vmatpush1.bf16.msra.mxu0 %v1368
    %1757 = vmatprep.subr.bf16.mxu0 0
    %1758 = vmatpush1.bf16.msra.mxu0 %v1369
    %1759 = vmatprep.subr.bf16.mxu0 0
    %1760 = vmatpush1.bf16.msra.mxu0 %v1370
    %1761 = vmatprep.subr.bf16.mxu0 0
    %1762 = vmatpush1.bf16.msra.mxu0 %v1371
    %1763 = vmatprep.subr.bf16.mxu0 0
    %1764 = vmatpush1.bf16.msra.mxu0 %v1372
    %1765 = vmatprep.subr.bf16.mxu0 0
    %1766 = vmatpush1.bf16.msra.mxu0 %v1373
    %1767 = vmatprep.subr.bf16.mxu0 0
    %1768 = vmatpush1.bf16.msra.mxu0 %v1374
    %1769 = vmatprep.subr.bf16.mxu0 0
    %1770 = vmatpush1.bf16.msra.mxu0 %v1375
    %1771 = vmatprep.subr.bf16.mxu0 0
    %1772 = vmatpush1.bf16.msra.mxu0 %v1376
    %1773 = vmatprep.subr.bf16.mxu0 0
    %1774 = vmatpush1.bf16.msra.mxu0 %v1377
    %1775 = vmatprep.subr.bf16.mxu0 0
    %1776 = vmatpush1.bf16.msra.mxu0 %v1378
    %1777 = vmatprep.subr.bf16.mxu0 0
    %1778 = vmatpush1.bf16.msra.mxu0 %v1379
    %1779 = vmatprep.subr.bf16.mxu0 0
    %1780 = vmatpush1.bf16.msra.mxu0 %v1380
    %1781 = vmatprep.mubr.bf16.mxu0 %v550
    %1782 = vmatmul.mubr.bf16.gmra.mrb[0].mxu0 %v549
    %v1783 = vpop.f32.mrb[0].mxu0
    %v1784 = vadd.f32 %v475, %v1783
    %v1785 = vpop.f32.mrb[0].mxu0
    %v1786 = vpop.f32.mrb[0].mxu0
    %v1787 = vadd.f32 %v475, %v1786
    %v1788 = vpop.f32.mrb[0].mxu0
    %1789 = vdwg.mxu0
    %1790 = vmatprep.subr.bf16.mxu0 0
    %1791 = vmatpush1.bf16.msra.mxu0 %v1381
    %1792 = vmatprep.subr.bf16.mxu0 0
    %1793 = vmatpush1.bf16.msra.mxu0 %v1382
    %1794 = vmatprep.subr.bf16.mxu0 0
    %1795 = vmatpush1.bf16.msra.mxu0 %v1383
    %1796 = vmatprep.subr.bf16.mxu0 0
    %1797 = vmatpush1.bf16.msra.mxu0 %v1384
    %1798 = vmatprep.subr.bf16.mxu0 0
    %1799 = vmatpush1.bf16.msra.mxu0 %v1385
    %1800 = vmatprep.subr.bf16.mxu0 0
    %1801 = vmatpush1.bf16.msra.mxu0 %v1386
    %1802 = vmatprep.subr.bf16.mxu0 0
    %1803 = vmatpush1.bf16.msra.mxu0 %v1387
    %1804 = vmatprep.subr.bf16.mxu0 0
    %1805 = vmatpush1.bf16.msra.mxu0 %v1388
    %1806 = vmatprep.subr.bf16.mxu0 0
    %1807 = vmatpush1.bf16.msra.mxu0 %v1389
    %1808 = vmatprep.subr.bf16.mxu0 0
    %1809 = vmatpush1.bf16.msra.mxu0 %v1390
    %1810 = vmatprep.subr.bf16.mxu0 0
    %1811 = vmatpush1.bf16.msra.mxu0 %v1391
    %1812 = vmatprep.subr.bf16.mxu0 0
    %1813 = vmatpush1.bf16.msra.mxu0 %v1392
    %1814 = vmatprep.subr.bf16.mxu0 0
    %1815 = vmatpush1.bf16.msra.mxu0 %v1393
    %1816 = vmatprep.subr.bf16.mxu0 0
    %1817 = vmatpush1.bf16.msra.mxu0 %v1394
    %1818 = vmatprep.subr.bf16.mxu0 0
    %1819 = vmatpush1.bf16.msra.mxu0 %v1395
    %1820 = vmatprep.subr.bf16.mxu0 0
    %1821 = vmatpush1.bf16.msra.mxu0 %v1396
    %1822 = vmatprep.mubr.bf16.mxu0 %v552
    %1823 = vmatmul.mubr.bf16.gmra.mrb[0].mxu0 %v551
    %v1824 = vpop.f32.mrb[0].mxu0
    %v1825 = vadd.f32 %v1784, %v1824
    %v1826 = vpop.f32.mrb[0].mxu0
    %v1827 = vpop.f32.mrb[0].mxu0
    %v1828 = vadd.f32 %v1787, %v1827
    %v1829 = vpop.f32.mrb[0].mxu0
    %1830 = vdwg.mxu0
    %1831 = vmatprep.subr.bf16.mxu0 0
    %1832 = vmatpush1.bf16.msra.mxu0 %v1397
    %1833 = vmatprep.subr.bf16.mxu0 0
    %1834 = vmatpush1.bf16.msra.mxu0 %v1398
    %1835 = vmatprep.subr.bf16.mxu0 0
    %1836 = vmatpush1.bf16.msra.mxu0 %v1399
    %1837 = vmatprep.subr.bf16.mxu0 0
    %1838 = vmatpush1.bf16.msra.mxu0 %v1400
    %1839 = vmatprep.subr.bf16.mxu0 0
    %1840 = vmatpush1.bf16.msra.mxu0 %v1401
    %1841 = vmatprep.subr.bf16.mxu0 0
    %1842 = vmatpush1.bf16.msra.mxu0 %v1402
    %1843 = vmatprep.subr.bf16.mxu0 0
    %1844 = vmatpush1.bf16.msra.mxu0 %v1403
    %1845 = vmatprep.subr.bf16.mxu0 0
    %1846 = vmatpush1.bf16.msra.mxu0 %v1404
    %1847 = vmatprep.subr.bf16.mxu0 0
    %1848 = vmatpush1.bf16.msra.mxu0 %v1405
    %1849 = vmatprep.subr.bf16.mxu0 0
    %1850 = vmatpush1.bf16.msra.mxu0 %v1406
    %1851 = vmatprep.subr.bf16.mxu0 0
    %1852 = vmatpush1.bf16.msra.mxu0 %v1407
    %1853 = vmatprep.subr.bf16.mxu0 0
    %1854 = vmatpush1.bf16.msra.mxu0 %v1408
    %1855 = vmatprep.subr.bf16.mxu0 0
    %1856 = vmatpush1.bf16.msra.mxu0 %v1409
    %1857 = vmatprep.subr.bf16.mxu0 0
    %1858 = vmatpush1.bf16.msra.mxu0 %v1410
    %1859 = vmatprep.subr.bf16.mxu0 0
    %1860 = vmatpush1.bf16.msra.mxu0 %v1411
    %1861 = vmatprep.subr.bf16.mxu0 0
    %1862 = vmatpush1.bf16.msra.mxu0 %v1412
    %1863 = vmatprep.mubr.bf16.mxu0 %v554
    %1864 = vmatmul.mubr.bf16.gmra.mrb[0].mxu0 %v553
    %v1865 = vpop.f32.mrb[0].mxu0
    %v1866 = vadd.f32 %v1825, %v1865
    %v1867 = vpop.f32.mrb[0].mxu0
    %v1868 = vpop.f32.mrb[0].mxu0
    %v1869 = vadd.f32 %v1828, %v1868
    %v1870 = vpop.f32.mrb[0].mxu0
    %1871 = vdwg.mxu0
    %1872 = vmatprep.subr.bf16.mxu0 0
    %1873 = vmatpush1.bf16.msra.mxu0 %v1413
    %1874 = vmatprep.subr.bf16.mxu0 0
    %1875 = vmatpush1.bf16.msra.mxu0 %v1414
    %1876 = vmatprep.subr.bf16.mxu0 0
    %1877 = vmatpush1.bf16.msra.mxu0 %v1415
    %1878 = vmatprep.subr.bf16.mxu0 0
    %1879 = vmatpush1.bf16.msra.mxu0 %v1416
    %1880 = vmatprep.subr.bf16.mxu0 0
    %1881 = vmatpush1.bf16.msra.mxu0 %v1417
    %1882 = vmatprep.subr.bf16.mxu0 0
    %1883 = vmatpush1.bf16.msra.mxu0 %v1418
    %1884 = vmatprep.subr.bf16.mxu0 0
    %1885 = vmatpush1.bf16.msra.mxu0 %v1419
    %1886 = vmatprep.subr.bf16.mxu0 0
    %1887 = vmatpush1.bf16.msra.mxu0 %v1420
    %1888 = vmatprep.subr.bf16.mxu0 0
    %1889 = vmatpush1.bf16.msra.mxu0 %v1421
    %1890 = vmatprep.subr.bf16.mxu0 0
    %1891 = vmatpush1.bf16.msra.mxu0 %v1422
    %1892 = vmatprep.subr.bf16.mxu0 0
    %1893 = vmatpush1.bf16.msra.mxu0 %v1423
    %1894 = vmatprep.subr.bf16.mxu0 0
    %1895 = vmatpush1.bf16.msra.mxu0 %v1424
    %1896 = vmatprep.subr.bf16.mxu0 0
    %1897 = vmatpush1.bf16.msra.mxu0 %v1425
    %1898 = vmatprep.subr.bf16.mxu0 0
    %1899 = vmatpush1.bf16.msra.mxu0 %v1426
    %1900 = vmatprep.subr.bf16.mxu0 0
    %1901 = vmatpush1.bf16.msra.mxu0 %v1427
    %1902 = vmatprep.subr.bf16.mxu0 0
    %1903 = vmatpush1.bf16.msra.mxu0 %v1428
    %1904 = vmatprep.mubr.bf16.mxu0 %v556
    %1905 = vmatmul.mubr.bf16.gmra.mrb[0].mxu0 %v555
    %v1906 = vpop.f32.mrb[0].mxu0
    %v1907 = vadd.f32 %v1866, %v1906
    %v1908 = vpop.f32.mrb[0].mxu0
    %v1909 = vpop.f32.mrb[0].mxu0
    %v1910 = vadd.f32 %v1869, %v1909
    %v1911 = vpop.f32.mrb[0].mxu0
    %1912 = vdwg.mxu0
    %1913 = vmatprep.subr.bf16.mxu0 0
    %1914 = vmatpush1.bf16.msra.mxu0 %v1429
    %1915 = vmatprep.subr.bf16.mxu0 0
    %1916 = vmatpush1.bf16.msra.mxu0 %v1430
    %1917 = vmatprep.subr.bf16.mxu0 0
    %1918 = vmatpush1.bf16.msra.mxu0 %v1431
    %1919 = vmatprep.subr.bf16.mxu0 0
    %1920 = vmatpush1.bf16.msra.mxu0 %v1432
    %1921 = vmatprep.subr.bf16.mxu0 0
    %1922 = vmatpush1.bf16.msra.mxu0 %v1433
    %1923 = vmatprep.subr.bf16.mxu0 0
    %1924 = vmatpush1.bf16.msra.mxu0 %v1434
    %1925 = vmatprep.subr.bf16.mxu0 0
    %1926 = vmatpush1.bf16.msra.mxu0 %v1435
    %1927 = vmatprep.subr.bf16.mxu0 0
    %1928 = vmatpush1.bf16.msra.mxu0 %v1436
    %1929 = vmatprep.subr.bf16.mxu0 0
    %1930 = vmatpush1.bf16.msra.mxu0 %v1437
    %1931 = vmatprep.subr.bf16.mxu0 0
    %1932 = vmatpush1.bf16.msra.mxu0 %v1438
    %1933 = vmatprep.subr.bf16.mxu0 0
    %1934 = vmatpush1.bf16.msra.mxu0 %v1439
    %1935 = vmatprep.subr.bf16.mxu0 0
    %1936 = vmatpush1.bf16.msra.mxu0 %v1440
    %1937 = vmatprep.subr.bf16.mxu0 0
    %1938 = vmatpush1.bf16.msra.mxu0 %v1441
    %1939 = vmatprep.subr.bf16.mxu0 0
    %1940 = vmatpush1.bf16.msra.mxu0 %v1442
    %1941 = vmatprep.subr.bf16.mxu0 0
    %1942 = vmatpush1.bf16.msra.mxu0 %v1443
    %1943 = vmatprep.subr.bf16.mxu0 0
    %1944 = vmatpush1.bf16.msra.mxu0 %v1444
    %1945 = vmatprep.mubr.bf16.mxu0 %v558
    %1946 = vmatmul.mubr.bf16.gmra.mrb[0].mxu0 %v557
    %v1947 = vpop.f32.mrb[0].mxu0
    %v1948 = vadd.f32 %v1907, %v1947
    %v1949 = vpop.f32.mrb[0].mxu0
    %v1950 = vpop.f32.mrb[0].mxu0
    %v1951 = vadd.f32 %v1910, %v1950
    %v1952 = vpop.f32.mrb[0].mxu0
    %1953 = vdwg.mxu0
    %1954 = vmatprep.subr.bf16.mxu0 0
    %1955 = vmatpush1.bf16.msra.mxu0 %v1445
    %1956 = vmatprep.subr.bf16.mxu0 0
    %1957 = vmatpush1.bf16.msra.mxu0 %v1446
    %1958 = vmatprep.subr.bf16.mxu0 0
    %1959 = vmatpush1.bf16.msra.mxu0 %v1447
    %1960 = vmatprep.subr.bf16.mxu0 0
    %1961 = vmatpush1.bf16.msra.mxu0 %v1448
    %1962 = vmatprep.subr.bf16.mxu0 0
    %1963 = vmatpush1.bf16.msra.mxu0 %v1449
    %1964 = vmatprep.subr.bf16.mxu0 0
    %1965 = vmatpush1.bf16.msra.mxu0 %v1450
    %1966 = vmatprep.subr.bf16.mxu0 0
    %1967 = vmatpush1.bf16.msra.mxu0 %v1451
    %1968 = vmatprep.subr.bf16.mxu0 0
    %1969 = vmatpush1.bf16.msra.mxu0 %v1452
    %1970 = vmatprep.subr.bf16.mxu0 0
    %1971 = vmatpush1.bf16.msra.mxu0 %v1453
    %1972 = vmatprep.subr.bf16.mxu0 0
    %1973 = vmatpush1.bf16.msra.mxu0 %v1454
    %1974 = vmatprep.subr.bf16.mxu0 0
    %1975 = vmatpush1.bf16.msra.mxu0 %v1455
    %1976 = vmatprep.subr.bf16.mxu0 0
    %1977 = vmatpush1.bf16.msra.mxu0 %v1456
    %1978 = vmatprep.subr.bf16.mxu0 0
    %1979 = vmatpush1.bf16.msra.mxu0 %v1457
    %1980 = vmatprep.subr.bf16.mxu0 0
    %1981 = vmatpush1.bf16.msra.mxu0 %v1458
    %1982 = vmatprep.subr.bf16.mxu0 0
    %1983 = vmatpush1.bf16.msra.mxu0 %v1459
    %1984 = vmatprep.subr.bf16.mxu0 0
    %1985 = vmatpush1.bf16.msra.mxu0 %v1460
    %1986 = vmatprep.mubr.bf16.mxu0 %v560
    %1987 = vmatmul.mubr.bf16.gmra.mrb[0].mxu0 %v559
    %v1988 = vpop.f32.mrb[0].mxu0
    %v1989 = vadd.f32 %v1948, %v1988
    %v1990 = vpop.f32.mrb[0].mxu0
    %v1991 = vpop.f32.mrb[0].mxu0
    %v1992 = vadd.f32 %v1951, %v1991
    %v1993 = vpop.f32.mrb[0].mxu0
    %1994 = vdwg.mxu0
    %1995 = vmatprep.subr.bf16.mxu0 0
    %1996 = vmatpush1.bf16.msra.mxu0 %v1461
    %1997 = vmatprep.subr.bf16.mxu0 0
    %1998 = vmatpush1.bf16.msra.mxu0 %v1462
    %1999 = vmatprep.subr.bf16.mxu0 0
    %2000 = vmatpush1.bf16.msra.mxu0 %v1463
    %2001 = vmatprep.subr.bf16.mxu0 0
    %2002 = vmatpush1.bf16.msra.mxu0 %v1464
    %2003 = vmatprep.subr.bf16.mxu0 0
    %2004 = vmatpush1.bf16.msra.mxu0 %v1465
    %2005 = vmatprep.subr.bf16.mxu0 0
    %2006 = vmatpush1.bf16.msra.mxu0 %v1466
    %2007 = vmatprep.subr.bf16.mxu0 0
    %2008 = vmatpush1.bf16.msra.mxu0 %v1467
    %2009 = vmatprep.subr.bf16.mxu0 0
    %2010 = vmatpush1.bf16.msra.mxu0 %v1468
    %2011 = vmatprep.subr.bf16.mxu0 0
    %2012 = vmatpush1.bf16.msra.mxu0 %v1469
    %2013 = vmatprep.subr.bf16.mxu0 0
    %2014 = vmatpush1.bf16.msra.mxu0 %v1470
    %2015 = vmatprep.subr.bf16.mxu0 0
    %2016 = vmatpush1.bf16.msra.mxu0 %v1471
    %2017 = vmatprep.subr.bf16.mxu0 0
    %2018 = vmatpush1.bf16.msra.mxu0 %v1472
    %2019 = vmatprep.subr.bf16.mxu0 0
    %2020 = vmatpush1.bf16.msra.mxu0 %v1473
    %2021 = vmatprep.subr.bf16.mxu0 0
    %2022 = vmatpush1.bf16.msra.mxu0 %v1474
    %2023 = vmatprep.subr.bf16.mxu0 0
    %2024 = vmatpush1.bf16.msra.mxu0 %v1475
    %2025 = vmatprep.subr.bf16.mxu0 0
    %2026 = vmatpush1.bf16.msra.mxu0 %v1476
    %2027 = vmatprep.mubr.bf16.mxu0 %v562
    %2028 = vmatmul.mubr.bf16.gmra.mrb[0].mxu0 %v561
    %v2029 = vpop.f32.mrb[0].mxu0
    %v2030 = vadd.f32 %v1989, %v2029
    %v2031 = vpop.f32.mrb[0].mxu0
    %v2032 = vpop.f32.mrb[0].mxu0
    %v2033 = vadd.f32 %v1992, %v2032
    %v2034 = vpop.f32.mrb[0].mxu0
    %2035 = vdwg.mxu0
    %2036 = vmatprep.subr.bf16.mxu0 0
    %2037 = vmatpush1.bf16.msra.mxu0 %v1477
    %2038 = vmatprep.subr.bf16.mxu0 0
    %2039 = vmatpush1.bf16.msra.mxu0 %v1478
    %2040 = vmatprep.subr.bf16.mxu0 0
    %2041 = vmatpush1.bf16.msra.mxu0 %v1479
    %2042 = vmatprep.subr.bf16.mxu0 0
    %2043 = vmatpush1.bf16.msra.mxu0 %v1480
    %2044 = vmatprep.subr.bf16.mxu0 0
    %2045 = vmatpush1.bf16.msra.mxu0 %v1481
    %2046 = vmatprep.subr.bf16.mxu0 0
    %2047 = vmatpush1.bf16.msra.mxu0 %v1482
    %2048 = vmatprep.subr.bf16.mxu0 0
    %2049 = vmatpush1.bf16.msra.mxu0 %v1483
    %2050 = vmatprep.subr.bf16.mxu0 0
    %2051 = vmatpush1.bf16.msra.mxu0 %v1484
    %2052 = vmatprep.subr.bf16.mxu0 0
    %2053 = vmatpush1.bf16.msra.mxu0 %v1485
    %2054 = vmatprep.subr.bf16.mxu0 0
    %2055 = vmatpush1.bf16.msra.mxu0 %v1486
    %2056 = vmatprep.subr.bf16.mxu0 0
    %2057 = vmatpush1.bf16.msra.mxu0 %v1487
    %2058 = vmatprep.subr.bf16.mxu0 0
    %2059 = vmatpush1.bf16.msra.mxu0 %v1488
    %2060 = vmatprep.subr.bf16.mxu0 0
    %2061 = vmatpush1.bf16.msra.mxu0 %v1489
    %2062 = vmatprep.subr.bf16.mxu0 0
    %2063 = vmatpush1.bf16.msra.mxu0 %v1490
    %2064 = vmatprep.subr.bf16.mxu0 0
    %2065 = vmatpush1.bf16.msra.mxu0 %v1491
    %2066 = vmatprep.subr.bf16.mxu0 0
    %2067 = vmatpush1.bf16.msra.mxu0 %v1492
    %2068 = vmatprep.mubr.bf16.mxu0 %v564
    %2069 = vmatmul.mubr.bf16.gmra.mrb[0].mxu0 %v563
    %v2070 = vpop.f32.mrb[0].mxu0
    %v2071 = vadd.f32 %v2030, %v2070
    %v2072 = vpop.f32.mrb[0].mxu0
    %v2073 = vpop.f32.mrb[0].mxu0
    %v2074 = vadd.f32 %v2033, %v2073
    %v2075 = vpop.f32.mrb[0].mxu0
    %2076 = vdwg.mxu0
    %2077 = vmatprep.subr.bf16.mxu0 0
    %2078 = vmatpush1.bf16.msra.mxu0 %v1493
    %2079 = vmatprep.subr.bf16.mxu0 0
    %2080 = vmatpush1.bf16.msra.mxu0 %v1494
    %2081 = vmatprep.subr.bf16.mxu0 0
    %2082 = vmatpush1.bf16.msra.mxu0 %v1495
    %2083 = vmatprep.subr.bf16.mxu0 0
    %2084 = vmatpush1.bf16.msra.mxu0 %v1496
    %2085 = vmatprep.subr.bf16.mxu0 0
    %2086 = vmatpush1.bf16.msra.mxu0 %v1497
    %2087 = vmatprep.subr.bf16.mxu0 0
    %2088 = vmatpush1.bf16.msra.mxu0 %v1498
    %2089 = vmatprep.subr.bf16.mxu0 0
    %2090 = vmatpush1.bf16.msra.mxu0 %v1499
    %2091 = vmatprep.subr.bf16.mxu0 0
    %2092 = vmatpush1.bf16.msra.mxu0 %v1500
    %2093 = vmatprep.subr.bf16.mxu0 0
    %2094 = vmatpush1.bf16.msra.mxu0 %v1501
    %2095 = vmatprep.subr.bf16.mxu0 0
    %2096 = vmatpush1.bf16.msra.mxu0 %v1502
    %2097 = vmatprep.subr.bf16.mxu0 0
    %2098 = vmatpush1.bf16.msra.mxu0 %v1503
    %2099 = vmatprep.subr.bf16.mxu0 0
    %2100 = vmatpush1.bf16.msra.mxu0 %v1504
    %2101 = vmatprep.subr.bf16.mxu0 0
    %2102 = vmatpush1.bf16.msra.mxu0 %v1505
    %2103 = vmatprep.subr.bf16.mxu0 0
    %2104 = vmatpush1.bf16.msra.mxu0 %v1506
    %2105 = vmatprep.subr.bf16.mxu0 0
    %2106 = vmatpush1.bf16.msra.mxu0 %v1507
    %2107 = vmatprep.subr.bf16.mxu0 0
    %2108 = vmatpush1.bf16.msra.mxu0 %v1508
    %2109 = vmatprep.mubr.bf16.mxu0 %v566
    %2110 = vmatmul.mubr.bf16.gmra.mrb[0].mxu0 %v565
    %v2111 = vpop.f32.mrb[0].mxu0
    %v2112 = vadd.f32 %v2071, %v2111
    %v2113 = vpop.f32.mrb[0].mxu0
    %v2114 = vpop.f32.mrb[0].mxu0
    %v2115 = vadd.f32 %v2074, %v2114
    %v2116 = vpop.f32.mrb[0].mxu0
    %2117 = vdwg.mxu0
    %2118 = vmatprep.subr.bf16.mxu0 0
    %2119 = vmatpush1.bf16.msra.mxu0 %v1509
    %2120 = vmatprep.subr.bf16.mxu0 0
    %2121 = vmatpush1.bf16.msra.mxu0 %v1510
    %2122 = vmatprep.subr.bf16.mxu0 0
    %2123 = vmatpush1.bf16.msra.mxu0 %v1511
    %2124 = vmatprep.subr.bf16.mxu0 0
    %2125 = vmatpush1.bf16.msra.mxu0 %v1512
    %2126 = vmatprep.subr.bf16.mxu0 0
    %2127 = vmatpush1.bf16.msra.mxu0 %v1513
    %2128 = vmatprep.subr.bf16.mxu0 0
    %2129 = vmatpush1.bf16.msra.mxu0 %v1514
    %2130 = vmatprep.subr.bf16.mxu0 0
    %2131 = vmatpush1.bf16.msra.mxu0 %v1515
    %2132 = vmatprep.subr.bf16.mxu0 0
    %2133 = vmatpush1.bf16.msra.mxu0 %v1516
    %2134 = vmatprep.subr.bf16.mxu0 0
    %2135 = vmatpush1.bf16.msra.mxu0 %v1517
    %2136 = vmatprep.subr.bf16.mxu0 0
    %2137 = vmatpush1.bf16.msra.mxu0 %v1518
    %2138 = vmatprep.subr.bf16.mxu0 0
    %2139 = vmatpush1.bf16.msra.mxu0 %v1519
    %2140 = vmatprep.subr.bf16.mxu0 0
    %2141 = vmatpush1.bf16.msra.mxu0 %v1520
    %2142 = vmatprep.subr.bf16.mxu0 0
    %2143 = vmatpush1.bf16.msra.mxu0 %v1521
    %2144 = vmatprep.subr.bf16.mxu0 0
    %2145 = vmatpush1.bf16.msra.mxu0 %v1522
    %2146 = vmatprep.subr.bf16.mxu0 0
    %2147 = vmatpush1.bf16.msra.mxu0 %v1523
    %2148 = vmatprep.subr.bf16.mxu0 0
    %2149 = vmatpush1.bf16.msra.mxu0 %v1524
    %2150 = vmatprep.mubr.bf16.mxu0 %v568
    %2151 = vmatmul.mubr.bf16.gmra.mrb[0].mxu0 %v567
    %v2152 = vpop.f32.mrb[0].mxu0
    %v2153 = vadd.f32 %v2112, %v2152
    %v2154 = vpop.f32.mrb[0].mxu0
    %v2155 = vpop.f32.mrb[0].mxu0
    %v2156 = vadd.f32 %v2115, %v2155
    %v2157 = vpop.f32.mrb[0].mxu0
    %2158 = vdwg.mxu0
    %2159 = vmatprep.subr.bf16.mxu0 0
    %2160 = vmatpush1.bf16.msra.mxu0 %v1525
    %2161 = vmatprep.subr.bf16.mxu0 0
    %2162 = vmatpush1.bf16.msra.mxu0 %v1526
    %2163 = vmatprep.subr.bf16.mxu0 0
    %2164 = vmatpush1.bf16.msra.mxu0 %v1527
    %2165 = vmatprep.subr.bf16.mxu0 0
    %2166 = vmatpush1.bf16.msra.mxu0 %v1528
    %2167 = vmatprep.subr.bf16.mxu0 0
    %2168 = vmatpush1.bf16.msra.mxu0 %v1529
    %2169 = vmatprep.subr.bf16.mxu0 0
    %2170 = vmatpush1.bf16.msra.mxu0 %v1530
    %2171 = vmatprep.subr.bf16.mxu0 0
    %2172 = vmatpush1.bf16.msra.mxu0 %v1531
    %2173 = vmatprep.subr.bf16.mxu0 0
    %2174 = vmatpush1.bf16.msra.mxu0 %v1532
    %2175 = vmatprep.subr.bf16.mxu0 0
    %2176 = vmatpush1.bf16.msra.mxu0 %v1533
    %2177 = vmatprep.subr.bf16.mxu0 0
    %2178 = vmatpush1.bf16.msra.mxu0 %v1534
    %2179 = vmatprep.subr.bf16.mxu0 0
    %2180 = vmatpush1.bf16.msra.mxu0 %v1535
    %2181 = vmatprep.subr.bf16.mxu0 0
    %2182 = vmatpush1.bf16.msra.mxu0 %v1536
    %2183 = vmatprep.subr.bf16.mxu0 0
    %2184 = vmatpush1.bf16.msra.mxu0 %v1537
    %2185 = vmatprep.subr.bf16.mxu0 0
    %2186 = vmatpush1.bf16.msra.mxu0 %v1538
    %2187 = vmatprep.subr.bf16.mxu0 0
    %2188 = vmatpush1.bf16.msra.mxu0 %v1539
    %2189 = vmatprep.subr.bf16.mxu0 0
    %2190 = vmatpush1.bf16.msra.mxu0 %v1540
    %2191 = vmatprep.mubr.bf16.mxu0 %v570
    %2192 = vmatmul.mubr.bf16.gmra.mrb[0].mxu0 %v569
    %v2193 = vpop.f32.mrb[0].mxu0
    %v2194 = vadd.f32 %v2153, %v2193
    %v2195 = vpop.f32.mrb[0].mxu0
    %v2196 = vpop.f32.mrb[0].mxu0
    %v2197 = vadd.f32 %v2156, %v2196
    %v2198 = vpop.f32.mrb[0].mxu0
    %2199 = vdwg.mxu0
    %2200 = vmatprep.subr.bf16.mxu0 0
    %2201 = vmatpush1.bf16.msra.mxu0 %v1541
    %2202 = vmatprep.subr.bf16.mxu0 0
    %2203 = vmatpush1.bf16.msra.mxu0 %v1542
    %2204 = vmatprep.subr.bf16.mxu0 0
    %2205 = vmatpush1.bf16.msra.mxu0 %v1543
    %2206 = vmatprep.subr.bf16.mxu0 0
    %2207 = vmatpush1.bf16.msra.mxu0 %v1544
    %2208 = vmatprep.subr.bf16.mxu0 0
    %2209 = vmatpush1.bf16.msra.mxu0 %v1545
    %2210 = vmatprep.subr.bf16.mxu0 0
    %2211 = vmatpush1.bf16.msra.mxu0 %v1546
    %2212 = vmatprep.subr.bf16.mxu0 0
    %2213 = vmatpush1.bf16.msra.mxu0 %v1547
    %2214 = vmatprep.subr.bf16.mxu0 0
    %2215 = vmatpush1.bf16.msra.mxu0 %v1548
    %2216 = vmatprep.subr.bf16.mxu0 0
    %2217 = vmatpush1.bf16.msra.mxu0 %v1549
    %2218 = vmatprep.subr.bf16.mxu0 0
    %2219 = vmatpush1.bf16.msra.mxu0 %v1550
    %2220 = vmatprep.subr.bf16.mxu0 0
    %2221 = vmatpush1.bf16.msra.mxu0 %v1551
    %2222 = vmatprep.subr.bf16.mxu0 0
    %2223 = vmatpush1.bf16.msra.mxu0 %v1552
    %2224 = vmatprep.subr.bf16.mxu0 0
    %2225 = vmatpush1.bf16.msra.mxu0 %v1553
    %2226 = vmatprep.subr.bf16.mxu0 0
    %2227 = vmatpush1.bf16.msra.mxu0 %v1554
    %2228 = vmatprep.subr.bf16.mxu0 0
    %2229 = vmatpush1.bf16.msra.mxu0 %v1555
    %2230 = vmatprep.subr.bf16.mxu0 0
    %2231 = vmatpush1.bf16.msra.mxu0 %v1556
    %2232 = vmatprep.mubr.bf16.mxu0 %v572
    %2233 = vmatmul.mubr.bf16.gmra.mrb[0].mxu0 %v571
    %v2234 = vpop.f32.mrb[0].mxu0
    %v2235 = vadd.f32 %v2194, %v2234
    %v2236 = vpop.f32.mrb[0].mxu0
    %v2237 = vpop.f32.mrb[0].mxu0
    %v2238 = vadd.f32 %v2197, %v2237
    %v2239 = vpop.f32.mrb[0].mxu0
    %2240 = vdwg.mxu0
    %v2241 = vmax.f32 %v2235, 0.0
    %v2242 = vmax.f32 %v2238, 0.0
    %v2243 = vld [vmem:[#allocation6] sm:$0xff]
    %v2244 = vld [vmem:[#allocation6 + $0x8] sm:$0xff]
    %v2245 = vld [vmem:[#allocation6 + $0x10] sm:$0xff]
    %v2246 = vld [vmem:[#allocation6 + $0x18] sm:$0xff]
    %v2247 = vld [vmem:[#allocation6 + $0x20] sm:$0xff]
    %v2248 = vld [vmem:[#allocation6 + $0x28] sm:$0xff]
    %v2249 = vld [vmem:[#allocation6 + $0x30] sm:$0xff]
    %v2250 = vld [vmem:[#allocation6 + $0x38] sm:$0xff]
    %v2251 = vld [vmem:[#allocation6 + $0x40] sm:$0xff]
    %v2252 = vld [vmem:[#allocation6 + $0x48] sm:$0xff]
    %v2253 = vld [vmem:[#allocation6 + $0x50] sm:$0xff]
    %v2254 = vld [vmem:[#allocation6 + $0x58] sm:$0xff]
    %v2255 = vld [vmem:[#allocation6 + $0x60] sm:$0xff]
    %v2256 = vld [vmem:[#allocation6 + $0x68] sm:$0xff]
    %v2257 = vld [vmem:[#allocation6 + $0x70] sm:$0xff]
    %v2258 = vld [vmem:[#allocation6 + $0x78] sm:$0xff]
    %v2259 = vld [vmem:[%s4] sm:$0x1]
    %v2261 = vlaneseq
    %v2262 = vshrl.u32 %v2261, 7
    %v2263 = vsub.s32 0, %v2262
    %v2264 = vrot.slane %v2259, %v2263
    %2266 = vmatprep.subr.mxu0 0.0
    %2267 = vmatpush1.msra.mxu0 %v2243
    %2268 = vmatprep.subr.mxu0 0.0
    %2269 = vmatpush1.msra.mxu0 %v2244
    %2270 = vmatprep.subr.mxu0 0.0
    %2271 = vmatpush1.msra.mxu0 %v2245
    %2272 = vmatprep.subr.mxu0 0.0
    %2273 = vmatpush1.msra.mxu0 %v2246
    %2274 = vmatprep.subr.mxu0 0.0
    %2275 = vmatpush1.msra.mxu0 %v2247
    %2276 = vmatprep.subr.mxu0 0.0
    %2277 = vmatpush1.msra.mxu0 %v2248
    %2278 = vmatprep.subr.mxu0 0.0
    %2279 = vmatpush1.msra.mxu0 %v2249
    %2280 = vmatprep.subr.mxu0 0.0
    %2281 = vmatpush1.msra.mxu0 %v2250
    %2282 = vmatprep.subr.mxu0 0.0
    %2283 = vmatpush1.msra.mxu0 %v2251
    %2284 = vmatprep.subr.mxu0 0.0
    %2285 = vmatpush1.msra.mxu0 %v2252
    %2286 = vmatprep.subr.mxu0 0.0
    %2287 = vmatpush1.msra.mxu0 %v2253
    %2288 = vmatprep.subr.mxu0 0.0
    %2289 = vmatpush1.msra.mxu0 %v2254
    %2290 = vmatprep.subr.mxu0 0.0
    %2291 = vmatpush1.msra.mxu0 %v2255
    %2292 = vmatprep.subr.mxu0 0.0
    %2293 = vmatpush1.msra.mxu0 %v2256
    %2294 = vmatprep.subr.mxu0 0.0
    %2295 = vmatpush1.msra.mxu0 %v2257
    %2296 = vmatprep.subr.mxu0 0.0
    %2297 = vmatpush1.msra.mxu0 %v2258
    %2298 = vmatprep.subr.mxu0 0.0
    %2299 = vmatpush1.msra.mxu0 0.0
    %2300 = vmatprep.subr.mxu0 0.0
    %2301 = vmatpush1.msra.mxu0 0.0
    %2302 = vmatprep.subr.mxu0 0.0
    %2303 = vmatpush1.msra.mxu0 0.0
    %2304 = vmatprep.subr.mxu0 0.0
    %2305 = vmatpush1.msra.mxu0 0.0
    %2306 = vmatprep.subr.mxu0 0.0
    %2307 = vmatpush1.msra.mxu0 0.0
    %2308 = vmatprep.subr.mxu0 0.0
    %2309 = vmatpush1.msra.mxu0 0.0
    %2310 = vmatprep.subr.mxu0 0.0
    %2311 = vmatpush1.msra.mxu0 0.0
    %2312 = vmatprep.subr.mxu0 0.0
    %2313 = vmatpush1.msra.mxu0 0.0
    %2314 = vmatprep.subr.mxu0 0.0
    %2315 = vmatpush1.msra.mxu0 0.0
    %2316 = vmatprep.subr.mxu0 0.0
    %2317 = vmatpush1.msra.mxu0 0.0
    %2318 = vmatprep.subr.mxu0 0.0
    %2319 = vmatpush1.msra.mxu0 0.0
    %2320 = vmatprep.subr.mxu0 0.0
    %2321 = vmatpush1.msra.mxu0 0.0
    %2322 = vmatprep.subr.mxu0 0.0
    %2323 = vmatpush1.msra.mxu0 0.0
    %2324 = vmatprep.subr.mxu0 0.0
    %2325 = vmatpush1.msra.mxu0 0.0
    %2326 = vmatprep.subr.mxu0 0.0
    %2327 = vmatpush1.msra.mxu0 0.0
    %2328 = vmatprep.subr.mxu0 0.0
    %2329 = vmatpush1.msra.mxu0 0.0
    %2330 = vmatprep.mubr.f32.mxu0 0.0
    %2331 = vmatmul.mubr.f32.gmra.mrb[0].mxu0 %v2241
    %v2332 = vpop.f32.mrb[0].mxu0
    %v2333 = vadd.f32 %v2264, %v2332
    %v2334 = vpop.f32.mrb[0].mxu0
    %2335 = vmatprep.mubr.f32.mxu0 0.0
    %2336 = vmatmul.mubr.f32.gmra.mrb[0].mxu0 %v2242
    %v2337 = vpop.f32.mrb[0].mxu0
    %v2338 = vadd.f32 %v2264, %v2337
    %v2339 = vpop.f32.mrb[0].mxu0
    %2340 = vdwg.mxu0
    %2341 = vst [vmem:[#allocation7] sm:$0xff] %v2333
    %2342 = vst [vmem:[#allocation7 + $0x8] sm:$0xff] %v2338
    // Predicated region
    $region34: #{net_forward.1} parent=1 // pred_check
      _
    $region35: #{net_forward.1} parent=1 // pred_check_branch
      %2344 = sbr.rel (0) target = $region37
    $region36: #{net_forward.1} parent=1 // pred_region
      // Predicated region
      $region38: #{net_forward.1} parent=36 // pred_check
        _
      $region39: #{net_forward.1} parent=36 // pred_check_branch
        %2346 = sbr.rel (0) target = $region41
      $region40: #{net_forward.1} parent=36 // pred_region
        // Predicated region
        $region42: #{net_forward.1} parent=40 // pred_check
          _
        $region43: #{net_forward.1} parent=40 // pred_check_branch
          %2348 = sbr.rel (0) target = $region45
        $region44: #{net_forward.1} parent=40 // pred_region
          // Predicated region
          $region57: #{net_forward.1} parent=44 // pred_check
            _
          $region58: #{net_forward.1} parent=44 // pred_check_branch
            %2363 = sbr.rel (0) target = $region60
          $region59: #{net_forward.1} parent=44 // pred_region
            loop: start=0, step=1, limit=1
            $region61: #{net_forward.1} parent=59 // loop_pre_header
              _
            $region62: #{net_forward.1} parent=59 // loop_header
              %s2365 = sphi 0, %s2369
              %p2366 = scmp.ge.s32.totalorder %s2365, 1
              %s2370 = sphi [#allocation7], [#allocation7]
              %s2371 = sphi %s5, %s5
            $region63: #{net_forward.1} parent=59 // loop_header_branch
              %2368 = sbr.rel (%p2366) target = $region67
            $region64: #{net_forward.1} parent=59 // loop_body
              %v2372 = vld [vmem:[%s2370] sm:$0xff]
              %2373 = vst [vmem:[%s2371] sm:$0xff] %v2372
            $region65: #{net_forward.1} parent=59 // loop_footer
              %s2369 = sadd.s32 1, %s2365
            $region66: #{net_forward.1} parent=59 // loop_footer_branch
              %2364 = sbr.rel target = $region62
            $region67: #{net_forward.1} parent=59 // loop_exit
              _
          $region60: #{net_forward.1} parent=44 // pred_fallthru
            _
          // Predicated region
          $region68: #{net_forward.1} parent=44 // pred_check
            _
          $region69: #{net_forward.1} parent=44 // pred_check_branch
            %2375 = sbr.rel target = $region71
          $region70: #{net_forward.1} parent=44 // pred_region
            _
          $region71: #{net_forward.1} parent=44 // pred_fallthru
            _
        $region45: #{net_forward.1} parent=40 // pred_fallthru
          _
        // Predicated region
        $region46: #{net_forward.1} parent=40 // pred_check
          _
        $region47: #{net_forward.1} parent=40 // pred_check_branch
          %2350 = sbr.rel target = $region49
        $region48: #{net_forward.1} parent=40 // pred_region
          loop: start=0, step=1, limit=1
          $region50: #{net_forward.1} parent=48 // loop_pre_header
            _
          $region51: #{net_forward.1} parent=48 // loop_header
            %s2353 = sphi 0, %s2357
            %p2354 = scmp.ge.s32.totalorder %s2353, 1
            %s2358 = sphi [#allocation7], [#allocation7]
            %s2359 = sphi %s5, %s5
          $region52: #{net_forward.1} parent=48 // loop_header_branch
            %2356 = sbr.rel (%p2354) target = $region56
          $region53: #{net_forward.1} parent=48 // loop_body
            %v2360 = vld [vmem:[%s2358] sm:$0xff]
            %2361 = vst [vmem:[%s2359] sm:$0xff] %v2360
          $region54: #{net_forward.1} parent=48 // loop_footer
            %s2357 = sadd.s32 1, %s2353
          $region55: #{net_forward.1} parent=48 // loop_footer_branch
            %2352 = sbr.rel target = $region51
          $region56: #{net_forward.1} parent=48 // loop_exit
            _
        $region49: #{net_forward.1} parent=40 // pred_fallthru
          _
      $region41: #{net_forward.1} parent=36 // pred_fallthru
        _
      %2376 = vnop
    $region37: #{net_forward.1} parent=1 // pred_fallthru
      _
    // Predicated region
    $region72: #{net_forward.1} parent=1 // pred_check
      _
    $region73: #{net_forward.1} parent=1 // pred_check_branch
      %2378 = sbr.rel (0) target = $region75
    $region74: #{net_forward.1} parent=1 // pred_region
      _
    $region75: #{net_forward.1} parent=1 // pred_fallthru
      _
    %2379 = vsyncpa [#allocation3], 1
    %2380 = vsyncpa [#allocation5], 1

</llo_original>
